<compile_context>
chip_gen: v7x
topology: tpu7x:2x2x1
jax: 0.10.0
libtpu: 0.0.40
codegen_flags: <defaults>
</compile_context>

<pallas_src>
import functools
import math

import jax
import jax.numpy as jnp
from jax import lax
from jax.experimental import pallas as pl
from jax.experimental.pallas import tpu as pltpu

_VMEM = pl.BlockSpec(memory_space=pltpu.MemorySpace.VMEM)


def _round_up(x, m):
    return ((x + m - 1) // m) * m


# ----------------------------------------------------------------------------
# KPC_fu: a single fused kernel for the whole forward
# ----------------------------------------------------------------------------
def _kpc_fu_kernel(x_ref, c_ref, w_att_ref, w_pl_ref, b_pl_ref, pn_w_ref, pn_b_ref,
                   w_kv_i_ref, w_kv_a_ref, w_q_ref, wd_i_ref, wd_a_ref, bd_ref,
                   bn_g_ref, bn_b_ref, o_ref, *, mid, inv_scale):
    x = x_ref[...]              # (B, N, C)    point features, channel-last rows
    c = c_ref[...]              # (B, H, W, C) curves, channel-last
    B, N, C = x.shape
    _, H, W, _ = c.shape

    # line_conv_att: Conv2d(C -> 1, 1x1, bias=False), then softmax over W / over H.
    att = jnp.sum(c * w_att_ref[...], axis=-1, keepdims=True)          # (B, H, W, 1)

    def _softmax(a, axis):
        a = a - jnp.max(a, axis=axis, keepdims=True)
        e = jnp.exp(a)
        return e * pl.reciprocal(jnp.sum(e, axis=axis, keepdims=True), approx=True)

    s_last = _softmax(att, 2)                       # softmax over curve length (dim=-1)
    s_pen = _softmax(att, 1)                        # softmax over curve points (dim=-2)
    inter_rows = jnp.sum(c * s_last, axis=2)        # (B, H, C)   curver_inter (rows)
    intra_rows = jnp.sum(c * s_pen, axis=1)         # (B, W, C)   curves_intra (rows)

    # p branch (p = curves[0]).  The means commute with the 1x1 convs, so
    #   p_l = mean_W(Conv_pl(p))  == Conv_pl(mean_W(p))
    #   p_n = mean_mid(Conv_pn(p)) == p contracted with the channel-averaged weight.
    p = c[0]                                        # (H, W, C)
    pbar = jnp.mean(p, axis=1)                      # (H, C)
    p_l_add = jnp.dot(w_pl_ref[...], pbar,
                      preferred_element_type=jnp.float32) + b_pl_ref[...]   # (H, C)
    p_n_add = jnp.sum(p * pn_w_ref[...], axis=0) + pn_b_ref[...]            # (W, C)

    inter_rows = inter_rows + p_l_add[None]
    intra_rows = intra_rows + p_n_add[None]

    w_kv_i = w_kv_i_ref[...]    # (C, 2*mid)  [conva | conva_v]
    w_kv_a = w_kv_a_ref[...]    # (C, 2*mid)  [convb | convb_v]
    w_q = w_q_ref[...]          # (C, mid)
    wd_i = wd_i_ref[...]        # (mid, C)    ln_gamma-scaled convd (inter half)
    wd_a = wd_a_ref[...]        # (mid, C)    ln_gamma-scaled convd (intra half)
    bd = bd_ref[...]            # (1, C)      ln_beta folded through convd

    def _attend(q, kv):
        k, v = kv[:, :mid], kv[:, mid:]
        s = lax.dot_general(q, k, (((1,), (1,)), ((), ())),
                            preferred_element_type=jnp.float32) * inv_scale
        s = s - jnp.max(s, axis=-1, keepdims=True)
        e = jnp.exp(s)
        prob = e * pl.reciprocal(jnp.sum(e, axis=-1, keepdims=True), approx=True)
        return jnp.dot(prob, v, preferred_element_type=jnp.float32)

    inv_c = 1.0 / C
    ys = []
    for b in range(B):          # B is tiny and static -> unrolled
        kv_i = jnp.dot(inter_rows[b], w_kv_i, preferred_element_type=jnp.float32)  # (H, 2mid)
        kv_a = jnp.dot(intra_rows[b], w_kv_a, preferred_element_type=jnp.float32)  # (W, 2mid)
        q = jnp.dot(x[b], w_q, preferred_element_type=jnp.float32)                 # (N, mid)
        f_i = _attend(q, kv_i)                                                     # (N, mid)
        f_a = _attend(q, kv_a)                                                     # (N, mid)
        # LayerNorm over the (virtual) concat of the two halves; affine folded into convd.
        mu = (jnp.sum(f_i, -1, keepdims=True) + jnp.sum(f_a, -1, keepdims=True)) * inv_c
        d_i = f_i - mu
        d_a = f_a - mu
        var = (jnp.sum(d_i * d_i, -1, keepdims=True) +
               jnp.sum(d_a * d_a, -1, keepdims=True)) * inv_c
        inv_std = lax.rsqrt(var + 1e-5)
        y = (jnp.dot(d_i * inv_std, wd_i, preferred_element_type=jnp.float32) +
             jnp.dot(d_a * inv_std, wd_a, preferred_element_type=jnp.float32) + bd)
        ys.append(y)                                                               # (N, C)

    # BatchNorm1d (training-mode batch stats over all B*N rows) + residual + leaky_relu(0.2).
    # Stats are exact because the whole row range lives in this single kernel invocation.
    inv_rows = 1.0 / float(B * N)
    mu_bn = sum(jnp.sum(y, axis=0, keepdims=True) for y in ys) * inv_rows
    var_bn = sum(jnp.sum(jnp.square(y - mu_bn), axis=0, keepdims=True) for y in ys) * inv_rows
    scale = lax.rsqrt(var_bn + 1e-5) * bn_g_ref[...]
    shift = bn_b_ref[...]
    for b in range(B):
        z = x[b] + (ys[b] - mu_bn) * scale + shift
        o_ref[b] = jnp.where(z >= 0.0, z, 0.2 * z)


@jax.jit
def kpc_fu_forward(x, curves, prm):
    """KPC_fu.forward.  x: (B, C, N); curves: (B, C, 3, W).  Literal torch semantics
    require B == 2, curve_num == 3 and mid == C // 2 == 3."""
    B, C, N = x.shape
    mid = C // 2
    _, _, H, _ = curves.shape
    assert B == 2 and H == 3 and mid == 3, "literal KPC_fu semantics require B=2, H=3, mid=3"

    x_rows = jnp.transpose(x, (0, 2, 1))            # (B, N, C)   layout plumbing only
    c_nhwc = jnp.transpose(curves, (0, 2, 3, 1))    # (B, H, W, C)

    out = pl.pallas_call(
        functools.partial(_kpc_fu_kernel, mid=mid, inv_scale=1.0 / math.sqrt(mid)),
        out_shape=jax.ShapeDtypeStruct((B, N, C), jnp.float32),
        in_specs=[_VMEM] * 15,
        out_specs=_VMEM,
    )(x_rows, c_nhwc, prm["w_att"], prm["w_pl"], prm["b_pl"], prm["pn_w"], prm["pn_b"],
      prm["w_kv_i"], prm["w_kv_a"], prm["w_q"], prm["wd_i"], prm["wd_a"], prm["bd"],
      prm["bn_g"], prm["bn_b"])
    return jnp.transpose(out, (0, 2, 1))            # (B, C, N)


# ----------------------------------------------------------------------------
# curve_feature: both group halves in one kernel, Conv->Conv pairs pre-composed
# ----------------------------------------------------------------------------
def _curve_feature_kernel(r1_ref, r2_ref, w1_ref, w2_ref, o1_ref, o2_ref):
    o1_ref[...] = jnp.maximum(
        jnp.dot(r1_ref[...], w1_ref[...], preferred_element_type=jnp.float32), 0.0)
    o2_ref[...] = jnp.maximum(
        jnp.dot(r2_ref[...], w2_ref[...], preferred_element_type=jnp.float32), 0.0)


@jax.jit
def curve_feature_forward(group, prm):
    """curve_feature.forward.  group: (b, channel, H, W) with b even."""
    b, ch, H, W = group.shape
    c = b // 2
    rows = jnp.transpose(group, (0, 2, 3, 1))       # (b, H, W, ch)
    r1 = rows[:c].reshape(c * H * W, ch)
    r2 = rows[c:].reshape(c * H * W, ch)
    n1 = prm["w_g1"].shape[1]
    n2 = prm["w_g2"].shape[1]
    o1, o2 = pl.pallas_call(
        _curve_feature_kernel,
        out_shape=(jax.ShapeDtypeStruct((c * H * W, n1), jnp.float32),
                   jax.ShapeDtypeStruct((c * H * W, n2), jnp.float32)),
        in_specs=[_VMEM] * 4,
        out_specs=(_VMEM, _VMEM),
    )(r1, r2, prm["w_g1"], prm["w_g2"])

    def unrows(o, off, cout):
        return jnp.transpose(o[:, off:off + cout].reshape(c, H, W, cout), (0, 3, 1, 2))

    # branch output widths are architecture constants of curve_feature: 64/128/256/512
    return unrows(o1, 0, 64), unrows(o1, 64, 128), unrows(o2, 0, 256), unrows(o2, 256, 512)


# ----------------------------------------------------------------------------
# get_model classification head: two-pass row-tiled pipeline
# ----------------------------------------------------------------------------
def _head_stage1_kernel(x_ref, w1_ref, b1_ref, h_ref, stats_ref, *, m_valid, tr):
    i = pl.program_id(0)
    h = jnp.dot(x_ref[...], w1_ref[...], preferred_element_type=jnp.float32) + b1_ref[...]
    h_ref[...] = h

    @pl.when(i == 0)
    def _():
        stats_ref[...] = jnp.zeros_like(stats_ref)

    # masked accumulation of BatchNorm batch statistics (padded rows excluded);
    # single (2, hid) slab read-modify-write per tile.
    row = i * tr + lax.broadcasted_iota(jnp.int32, (tr, 1), 0)
    hm = h * (row < m_valid).astype(jnp.float32)
    delta = jnp.concatenate([jnp.sum(hm, axis=0, keepdims=True),
                             jnp.sum(hm * h, axis=0, keepdims=True)], axis=0)
    stats_ref[...] += delta


def _head_stage2_kernel(h_ref, stats_ref, gb_ref, w2_ref, b2_ref, o_ref, *, m_valid):
    inv_m = 1.0 / float(m_valid)
    stats = stats_ref[...]
    mean = stats[0:1, :] * inv_m
    var = stats[1:2, :] * inv_m - mean * mean
    h = (h_ref[...] - mean) * lax.rsqrt(var + 1e-5) * gb_ref[0:1, :] + gb_ref[1:2, :]
    h = jnp.maximum(h, 0.0)
    # TODO(synk): nn.Dropout(0.5) training RNG cannot be reproduced bit-exactly; identity here.
    logits = jnp.dot(h, w2_ref[...], preferred_element_type=jnp.float32) + b2_ref[...]
    logits = logits - jnp.max(logits, axis=-1, keepdims=True)
    o_ref[...] = logits - jnp.log(jnp.sum(jnp.exp(logits), axis=-1, keepdims=True))


@functools.partial(jax.jit, static_argnames=("nc",))
def head_forward(l0_points_1, prm, *, nc):
    """get_model tail: conv1 -> bn1(batch stats) -> relu -> dropout(id) -> conv1_1
    -> log_softmax(dim=1) -> permute(0, 2, 1).  Row-tiled so it scales with N."""
    B, cin, N = l0_points_1.shape
    hid = prm["w1"].shape[0]
    assert cin == hid
    M = B * N
    if M >= 512:
        tr = 512
    elif M >= 256:
        tr = 256
    else:
        tr = _round_up(M, 8)
    m_pad = _round_up(M, tr)
    grid = (m_pad // tr,)

    rows = jnp.transpose(l0_points_1, (0, 2, 1)).reshape(M, cin)
    rows = jnp.pad(rows, ((0, m_pad - M), (0, 0)))

    h, stats = pl.pallas_call(
        functools.partial(_head_stage1_kernel, m_valid=M, tr=tr),
        out_shape=(jax.ShapeDtypeStruct((m_pad, hid), jnp.float32),
                   jax.ShapeDtypeStruct((2, hid), jnp.float32)),
        grid=grid,
        in_specs=[pl.BlockSpec((tr, cin), lambda i: (i, 0)),
                  pl.BlockSpec((cin, hid), lambda i: (0, 0)),
                  pl.BlockSpec((1, hid), lambda i: (0, 0))],
        out_specs=(pl.BlockSpec((tr, hid), lambda i: (i, 0)),
                   pl.BlockSpec((2, hid), lambda i: (0, 0))),
        compiler_params=pltpu.CompilerParams(dimension_semantics=("arbitrary",)),
    )(rows, prm["w1"], prm["b1"])

    nc_pad = prm["w2"].shape[1]
    out = pl.pallas_call(
        functools.partial(_head_stage2_kernel, m_valid=M),
        out_shape=jax.ShapeDtypeStruct((m_pad, nc_pad), jnp.float32),
        grid=grid,
        in_specs=[pl.BlockSpec((tr, hid), lambda i: (i, 0)),
                  pl.BlockSpec((2, hid), lambda i: (0, 0)),
                  pl.BlockSpec((2, hid), lambda i: (0, 0)),
                  pl.BlockSpec((hid, nc_pad), lambda i: (0, 0)),
                  pl.BlockSpec((1, nc_pad), lambda i: (0, 0))],
        out_specs=pl.BlockSpec((tr, nc_pad), lambda i: (i, 0)),
        compiler_params=pltpu.CompilerParams(dimension_semantics=("parallel",)),
    )(h, stats, prm["gb"], prm["w2"], prm["b2"])

    return out[:M, :nc].reshape(B, N, nc)   # == log_softmax(dim=1).permute(0, 2, 1)


# ----------------------------------------------------------------------------
# Parameters: raw torch-layout weights + one-time kernel-ready preparation
# ----------------------------------------------------------------------------
def make_raw_params(key, num_classes=10, kpc_in_channel=6, cf_channel=16):
    C = kpc_in_channel
    mid = C // 2
    ks = list(jax.random.split(key, 32))
    it = iter(ks)

    def w(*shape):
        return 0.1 * jax.random.normal(next(it), shape, dtype=jnp.float32)

    kpc = dict(
        conva=w(mid, C), conva_v=w(mid, C), convb=w(mid, C), convb_v=w(mid, C),
        convc=w(mid, C), convd=w(C, 2 * mid),
        line_att=w(1, C),
        p_l_w=w(mid, 3), p_l_b=w(mid), p_n_w=w(mid, 3), p_n_b=w(mid),
        ln_g=jnp.ones((1, C), jnp.float32), ln_b=jnp.zeros((1, C), jnp.float32),
        bn_g=jnp.ones((1, C), jnp.float32), bn_b=jnp.zeros((1, C), jnp.float32),
    )
    cf = dict(
        w01=w(32, cf_channel), w02=w(64, 32),
        w11=w(64, cf_channel), w12=w(128, 64),
        w21=w(64, cf_channel), w22=w(256, 64),
        w31=w(128, cf_channel), w32=w(512, 128),
    )
    head = dict(
        conv1_w=w(128, 128), conv1_b=w(128),
        bn1_g=jnp.ones((1, 128), jnp.float32), bn1_b=jnp.zeros((1, 128), jnp.float32),
        conv1_1_w=w(num_classes, 128), conv1_1_b=w(num_classes),
    )
    return dict(kpc=kpc, cf=cf, head=head)


def prepare_kpc_params(raw):
    """One-time folding: weight transposes/concat, LayerNorm affine into convd, and the
    exact mean-commutation rewrite of p_l / p_n."""
    C = raw["conva"].shape[1]
    mid = C // 2
    f32 = lambda a: a.astype(jnp.float32)
    ln_g = f32(raw["ln_g"]).reshape(-1)
    ln_b = f32(raw["ln_b"]).reshape(-1)
    wd_t = f32(raw["convd"]).T                                   # (2*mid, C)
    wn = jnp.mean(f32(raw["p_n_w"]), axis=0)                     # (3,)
    return dict(
        w_att=f32(raw["line_att"]).reshape(1, C),
        w_pl=f32(raw["p_l_w"]),                                  # (mid, 3)
        b_pl=f32(raw["p_l_b"]).reshape(mid, 1),
        pn_w=jnp.broadcast_to(wn[:, None, None], (3, 1, C)).astype(jnp.float32),
        pn_b=jnp.full((1, C), jnp.mean(f32(raw["p_n_b"])), jnp.float32),
        w_kv_i=jnp.concatenate([f32(raw["conva"]).T, f32(raw["conva_v"]).T], axis=1),
        w_kv_a=jnp.concatenate([f32(raw["convb"]).T, f32(raw["convb_v"]).T], axis=1),
        w_q=f32(raw["convc"]).T,
        wd_i=ln_g[:mid][:, None] * wd_t[:mid],
        wd_a=ln_g[mid:][:, None] * wd_t[mid:],
        bd=(ln_b[:mid] @ wd_t[:mid] + ln_b[mid:] @ wd_t[mid:]).reshape(1, C),
        bn_g=f32(raw["bn_g"]).reshape(1, C),
        bn_b=f32(raw["bn_b"]).reshape(1, C),
    )


def prepare_cf_params(raw):
    """Each branch is Conv->Conv (both bias-free, no intermediate nonlinearity), so the
    pair composes into one matrix; branches sharing an input are concatenated lane-wise."""
    f32 = lambda a: a.astype(jnp.float32)
    w_g1 = jnp.concatenate([(f32(raw["w02"]) @ f32(raw["w01"])).T,
                            (f32(raw["w12"]) @ f32(raw["w11"])).T], axis=1)   # (ch, 192)
    w_g2 = jnp.concatenate([(f32(raw["w22"]) @ f32(raw["w21"])).T,
                            (f32(raw["w32"]) @ f32(raw["w31"])).T], axis=1)   # (ch, 768)
    return dict(w_g1=w_g1, w_g2=w_g2)


def prepare_head_params(raw, lane_pad=128):
    nc = raw["conv1_1_w"].shape[0]
    hid = raw["conv1_w"].shape[0]
    assert nc <= lane_pad
    f32 = lambda a: a.astype(jnp.float32)
    w2 = jnp.zeros((hid, lane_pad), jnp.float32).at[:, :nc].set(f32(raw["conv1_1_w"]).T)
    # padded classes get bias -1e30: exp underflows to 0, so the log_softmax normalizer
    # over the lane-dense 128-wide slab equals the true nc-class normalizer.
    b2 = jnp.full((1, lane_pad), -1e30, jnp.float32).at[:, :nc].set(f32(raw["conv1_1_b"]))
    return dict(
        w1=f32(raw["conv1_w"]).T,
        b1=f32(raw["conv1_b"]).reshape(1, -1),
        gb=jnp.concatenate([f32(raw["bn1_g"]).reshape(1, -1),
                            f32(raw["bn1_b"]).reshape(1, -1)], axis=0),
        w2=w2, b2=b2,
    )


def make_params(key, num_classes=10, kpc_in_channel=6, cf_channel=16):
    raw = make_raw_params(key, num_classes, kpc_in_channel, cf_channel)
    return dict(kpc=prepare_kpc_params(raw["kpc"]),
                cf=prepare_cf_params(raw["cf"]),
                head=prepare_head_params(raw["head"]))


# ----------------------------------------------------------------------------
# Demo
# ----------------------------------------------------------------------------
if __name__ == "__main__":
    key = jax.random.PRNGKey(0)
    pkey, xkey, ckey, gkey, hkey = jax.random.split(key, 5)
    params = make_params(pkey, num_classes=10)

    # KPC_fu (curve_agg_*) — in_channel=6 is the only size for which the literal torch
    # broadcasting in KPC_fu.forward is well-defined (mid == curve_num == 3, batch == 2).
    x = jax.random.normal(xkey, (2, 6, 16), jnp.float32)          # (B, C, N) point features
    curves = jax.random.normal(ckey, (2, 6, 3, 8), jnp.float32)   # (B, C, 3, curve_len)
    y_kpc = kpc_fu_forward(x, curves, params["kpc"])

    # curve_feature
    group = jax.random.normal(gkey, (4, 16, 3, 8), jnp.float32)   # (b, channel, H, W)
    feats = curve_feature_forward(group, params["cf"])

    # get_model classification head on l0_points_1-like features (128 channels)
    l0_feat = jax.random.normal(hkey, (2, 128, 32), jnp.float32)
    y_head = head_forward(l0_feat, params["head"], nc=10)

    jax.block_until_ready((y_kpc, feats, y_head))
    assert y_kpc.shape == (2, 6, 16)
    assert tuple(f.shape for f in feats) == ((2, 64, 3, 8), (2, 128, 3, 8),
                                             (2, 256, 3, 8), (2, 512, 3, 8))
    assert y_head.shape == (2, 32, 10)
    assert bool(jnp.all(jnp.isfinite(y_kpc))) and bool(jnp.all(jnp.isfinite(y_head)))
    print("KERNEL_OK")
</pallas_src>

<mosaic_0001>
module attributes {stable_mosaic.version = 11 : i64} {
  func.func @_kpc_fu_kernel(%arg0: memref<2x16x6xf32, #tpu.memory_space<vmem>>, %arg1: memref<2x3x8x6xf32, #tpu.memory_space<vmem>>, %arg2: memref<1x6xf32, #tpu.memory_space<vmem>>, %arg3: memref<3x3xf32, #tpu.memory_space<vmem>>, %arg4: memref<3x1xf32, #tpu.memory_space<vmem>>, %arg5: memref<3x1x6xf32, #tpu.memory_space<vmem>>, %arg6: memref<1x6xf32, #tpu.memory_space<vmem>>, %arg7: memref<6x6xf32, #tpu.memory_space<vmem>>, %arg8: memref<6x6xf32, #tpu.memory_space<vmem>>, %arg9: memref<6x3xf32, #tpu.memory_space<vmem>>, %arg10: memref<3x6xf32, #tpu.memory_space<vmem>>, %arg11: memref<3x6xf32, #tpu.memory_space<vmem>>, %arg12: memref<1x6xf32, #tpu.memory_space<vmem>>, %arg13: memref<1x6xf32, #tpu.memory_space<vmem>>, %arg14: memref<1x6xf32, #tpu.memory_space<vmem>>, %arg15: memref<2x16x6xf32, #tpu.memory_space<vmem>>) attributes {dimension_semantics = [], scalar_prefetch = 0 : i64, scratch_operands = 0 : i64, tpu.core_type = #tpu.core_type<tc>} {
    %c0 = arith.constant 0 : index
    %c0_0 = arith.constant 0 : index
    %c0_1 = arith.constant 0 : index
    %0 = vector.load %arg0[%c0, %c0_0, %c0_1] : memref<2x16x6xf32, #tpu.memory_space<vmem>>, vector<2x16x6xf32>
    %c0_2 = arith.constant 0 : index
    %c0_3 = arith.constant 0 : index
    %c0_4 = arith.constant 0 : index
    %c0_5 = arith.constant 0 : index
    %1 = vector.load %arg1[%c0_2, %c0_3, %c0_4, %c0_5] : memref<2x3x8x6xf32, #tpu.memory_space<vmem>>, vector<2x3x8x6xf32>
    %c0_6 = arith.constant 0 : index
    %c0_7 = arith.constant 0 : index
    %2 = vector.load %arg2[%c0_6, %c0_7] : memref<1x6xf32, #tpu.memory_space<vmem>>, vector<1x6xf32>
    %3 = vector.shape_cast %2 : vector<1x6xf32> to vector<1x1x1x6xf32>
    %4 = vector.broadcast %3 : vector<1x1x1x6xf32> to vector<2x3x8x6xf32>
    %5 = arith.mulf %1, %4 : vector<2x3x8x6xf32>
    %cst = arith.constant dense<0.000000e+00> : vector<2x3x8xf32>
    %6 = vector.multi_reduction <add>, %5, %cst [3] : vector<2x3x8x6xf32> to vector<2x3x8xf32>
    %7 = vector.shape_cast %6 : vector<2x3x8xf32> to vector<2x3x8x1xf32>
    %cst_8 = arith.constant dense<0xFF800000> : vector<2x3x1xf32>
    %8 = vector.multi_reduction <maximumf>, %7, %cst_8 [2] : vector<2x3x8x1xf32> to vector<2x3x1xf32>
    %9 = vector.shape_cast %8 : vector<2x3x1xf32> to vector<2x3x1x1xf32>
    %10 = vector.broadcast %9 : vector<2x3x1x1xf32> to vector<2x3x8x1xf32>
    %11 = arith.subf %7, %10 : vector<2x3x8x1xf32>
    %12 = math.exp %11 : vector<2x3x8x1xf32>
    %cst_9 = arith.constant dense<0.000000e+00> : vector<2x3x1xf32>
    %13 = vector.multi_reduction <add>, %12, %cst_9 [2] : vector<2x3x8x1xf32> to vector<2x3x1xf32>
    %14 = vector.shape_cast %13 : vector<2x3x1xf32> to vector<2x3x1x1xf32>
    %15 = tpu.reciprocal %14 {approx = true} : vector<2x3x1x1xf32> -> vector<2x3x1x1xf32>
    %16 = vector.broadcast %15 : vector<2x3x1x1xf32> to vector<2x3x8x1xf32>
    %17 = arith.mulf %12, %16 : vector<2x3x8x1xf32>
    %cst_10 = arith.constant dense<0xFF800000> : vector<2x8x1xf32>
    %18 = vector.multi_reduction <maximumf>, %7, %cst_10 [1] : vector<2x3x8x1xf32> to vector<2x8x1xf32>
    %19 = vector.shape_cast %18 : vector<2x8x1xf32> to vector<2x1x8x1xf32>
    %20 = vector.broadcast %19 : vector<2x1x8x1xf32> to vector<2x3x8x1xf32>
    %21 = arith.subf %7, %20 : vector<2x3x8x1xf32>
    %22 = math.exp %21 : vector<2x3x8x1xf32>
    %cst_11 = arith.constant dense<0.000000e+00> : vector<2x8x1xf32>
    %23 = vector.multi_reduction <add>, %22, %cst_11 [1] : vector<2x3x8x1xf32> to vector<2x8x1xf32>
    %24 = vector.shape_cast %23 : vector<2x8x1xf32> to vector<2x1x8x1xf32>
    %25 = tpu.reciprocal %24 {approx = true} : vector<2x1x8x1xf32> -> vector<2x1x8x1xf32>
    %26 = vector.broadcast %25 : vector<2x1x8x1xf32> to vector<2x3x8x1xf32>
    %27 = arith.mulf %22, %26 : vector<2x3x8x1xf32>
    %28 = vector.broadcast %17 : vector<2x3x8x1xf32> to vector<2x3x8x6xf32>
    %29 = arith.mulf %1, %28 : vector<2x3x8x6xf32>
    %cst_12 = arith.constant dense<0.000000e+00> : vector<2x3x6xf32>
    %30 = vector.multi_reduction <add>, %29, %cst_12 [2] : vector<2x3x8x6xf32> to vector<2x3x6xf32>
    %31 = vector.broadcast %27 : vector<2x3x8x1xf32> to vector<2x3x8x6xf32>
    %32 = arith.mulf %1, %31 : vector<2x3x8x6xf32>
    %cst_13 = arith.constant dense<0.000000e+00> : vector<2x8x6xf32>
    %33 = vector.multi_reduction <add>, %32, %cst_13 [1] : vector<2x3x8x6xf32> to vector<2x8x6xf32>
    %34 = vector.extract_strided_slice %1 {offsets = [0, 0, 0, 0], sizes = [1, 3, 8, 6], strides = [1, 1, 1, 1]} : vector<2x3x8x6xf32> to vector<1x3x8x6xf32>
    %35 = vector.shape_cast %34 : vector<1x3x8x6xf32> to vector<3x8x6xf32>
    %cst_14 = arith.constant dense<0.000000e+00> : vector<3x6xf32>
    %36 = vector.multi_reduction <add>, %35, %cst_14 [1] : vector<3x8x6xf32> to vector<3x6xf32>
    %cst_15 = arith.constant 8.000000e+00 : f32
    %37 = vector.broadcast %cst_15 : f32 to vector<3x6xf32>
    %38 = arith.divf %36, %37 : vector<3x6xf32>
    %c0_16 = arith.constant 0 : index
    %c0_17 = arith.constant 0 : index
    %39 = vector.load %arg3[%c0_16, %c0_17] : memref<3x3xf32, #tpu.memory_space<vmem>>, vector<3x3xf32>
    %cst_18 = arith.constant dense<0.000000e+00> : vector<3x6xf32>
    %40 = tpu.matmul %39, %38, %cst_18 {dimension_numbers = #tpu.dot_dimension_numbers<[1], [0], [0], [1], [0, 0, 1, 1], [], []>} : vector<3x3xf32>, vector<3x6xf32>, vector<3x6xf32> -> vector<3x6xf32>
    %c0_19 = arith.constant 0 : index
    %c0_20 = arith.constant 0 : index
    %41 = vector.load %arg4[%c0_19, %c0_20] : memref<3x1xf32, #tpu.memory_space<vmem>>, vector<3x1xf32>
    %42 = vector.broadcast %41 : vector<3x1xf32> to vector<3x6xf32>
    %43 = arith.addf %40, %42 : vector<3x6xf32>
    %c0_21 = arith.constant 0 : index
    %c0_22 = arith.constant 0 : index
    %c0_23 = arith.constant 0 : index
    %44 = vector.load %arg5[%c0_21, %c0_22, %c0_23] : memref<3x1x6xf32, #tpu.memory_space<vmem>>, vector<3x1x6xf32>
    %45 = vector.broadcast %44 : vector<3x1x6xf32> to vector<3x8x6xf32>
    %46 = arith.mulf %35, %45 : vector<3x8x6xf32>
    %cst_24 = arith.constant dense<0.000000e+00> : vector<8x6xf32>
    %47 = vector.multi_reduction <add>, %46, %cst_24 [0] : vector<3x8x6xf32> to vector<8x6xf32>
    %c0_25 = arith.constant 0 : index
    %c0_26 = arith.constant 0 : index
    %48 = vector.load %arg6[%c0_25, %c0_26] : memref<1x6xf32, #tpu.memory_space<vmem>>, vector<1x6xf32>
    %49 = vector.broadcast %48 : vector<1x6xf32> to vector<8x6xf32>
    %50 = arith.addf %47, %49 : vector<8x6xf32>
    %51 = vector.shape_cast %43 : vector<3x6xf32> to vector<1x3x6xf32>
    %52 = vector.broadcast %51 : vector<1x3x6xf32> to vector<2x3x6xf32>
    %53 = arith.addf %30, %52 : vector<2x3x6xf32>
    %54 = vector.shape_cast %50 : vector<8x6xf32> to vector<1x8x6xf32>
    %55 = vector.broadcast %54 : vector<1x8x6xf32> to vector<2x8x6xf32>
    %56 = arith.addf %33, %55 : vector<2x8x6xf32>
    %c0_27 = arith.constant 0 : index
    %c0_28 = arith.constant 0 : index
    %57 = vector.load %arg7[%c0_27, %c0_28] : memref<6x6xf32, #tpu.memory_space<vmem>>, vector<6x6xf32>
    %c0_29 = arith.constant 0 : index
    %c0_30 = arith.constant 0 : index
    %58 = vector.load %arg8[%c0_29, %c0_30] : memref<6x6xf32, #tpu.memory_space<vmem>>, vector<6x6xf32>
    %c0_31 = arith.constant 0 : index
    %c0_32 = arith.constant 0 : index
    %59 = vector.load %arg9[%c0_31, %c0_32] : memref<6x3xf32, #tpu.memory_space<vmem>>, vector<6x3xf32>
    %c0_33 = arith.constant 0 : index
    %c0_34 = arith.constant 0 : index
    %60 = vector.load %arg10[%c0_33, %c0_34] : memref<3x6xf32, #tpu.memory_space<vmem>>, vector<3x6xf32>
    %c0_35 = arith.constant 0 : index
    %c0_36 = arith.constant 0 : index
    %61 = vector.load %arg11[%c0_35, %c0_36] : memref<3x6xf32, #tpu.memory_space<vmem>>, vector<3x6xf32>
    %c0_37 = arith.constant 0 : index
    %c0_38 = arith.constant 0 : index
    %62 = vector.load %arg12[%c0_37, %c0_38] : memref<1x6xf32, #tpu.memory_space<vmem>>, vector<1x6xf32>
    %63 = vector.extract_strided_slice %53 {offsets = [0, 0, 0], sizes = [1, 3, 6], strides = [1, 1, 1]} : vector<2x3x6xf32> to vector<1x3x6xf32>
    %64 = vector.shape_cast %63 : vector<1x3x6xf32> to vector<3x6xf32>
    %cst_39 = arith.constant dense<0.000000e+00> : vector<3x6xf32>
    %65 = tpu.matmul %64, %57, %cst_39 {dimension_numbers = #tpu.dot_dimension_numbers<[1], [0], [0], [1], [0, 0, 1, 1], [], []>} : vector<3x6xf32>, vector<6x6xf32>, vector<3x6xf32> -> vector<3x6xf32>
    %66 = vector.extract_strided_slice %56 {offsets = [0, 0, 0], sizes = [1, 8, 6], strides = [1, 1, 1]} : vector<2x8x6xf32> to vector<1x8x6xf32>
    %67 = vector.shape_cast %66 : vector<1x8x6xf32> to vector<8x6xf32>
    %cst_40 = arith.constant dense<0.000000e+00> : vector<8x6xf32>
    %68 = tpu.matmul %67, %58, %cst_40 {dimension_numbers = #tpu.dot_dimension_numbers<[1], [0], [0], [1], [0, 0, 1, 1], [], []>} : vector<8x6xf32>, vector<6x6xf32>, vector<8x6xf32> -> vector<8x6xf32>
    %69 = vector.extract_strided_slice %0 {offsets = [0, 0, 0], sizes = [1, 16, 6], strides = [1, 1, 1]} : vector<2x16x6xf32> to vector<1x16x6xf32>
    %70 = vector.shape_cast %69 : vector<1x16x6xf32> to vector<16x6xf32>
    %cst_41 = arith.constant dense<0.000000e+00> : vector<16x3xf32>
    %71 = tpu.matmul %70, %59, %cst_41 {dimension_numbers = #tpu.dot_dimension_numbers<[1], [0], [0], [1], [0, 0, 1, 1], [], []>} : vector<16x6xf32>, vector<6x3xf32>, vector<16x3xf32> -> vector<16x3xf32>
    %72 = vector.extract_strided_slice %65 {offsets = [0, 0], sizes = [3, 3], strides = [1, 1]} : vector<3x6xf32> to vector<3x3xf32>
    %73 = vector.extract_strided_slice %65 {offsets = [0, 3], sizes = [3, 3], strides = [1, 1]} : vector<3x6xf32> to vector<3x3xf32>
    %cst_42 = arith.constant dense<0.000000e+00> : vector<16x3xf32>
    %74 = tpu.matmul %71, %72, %cst_42 {dimension_numbers = #tpu.dot_dimension_numbers<[1], [1], [0], [0], [0, 0, 1, 0], [], []>} : vector<16x3xf32>, vector<3x3xf32>, vector<16x3xf32> -> vector<16x3xf32>
    %cst_43 = arith.constant 0.577350259 : f32
    %75 = vector.broadcast %cst_43 : f32 to vector<16x3xf32>
    %76 = arith.mulf %74, %75 : vector<16x3xf32>
    %cst_44 = arith.constant dense<0xFF800000> : vector<16xf32>
    %77 = vector.multi_reduction <maximumf>, %76, %cst_44 [1] : vector<16x3xf32> to vector<16xf32>
    %78 = vector.shape_cast %77 : vector<16xf32> to vector<16x1xf32>
    %79 = vector.broadcast %78 : vector<16x1xf32> to vector<16x3xf32>
    %80 = arith.subf %76, %79 : vector<16x3xf32>
    %81 = math.exp %80 : vector<16x3xf32>
    %cst_45 = arith.constant dense<0.000000e+00> : vector<16xf32>
    %82 = vector.multi_reduction <add>, %81, %cst_45 [1] : vector<16x3xf32> to vector<16xf32>
    %83 = vector.shape_cast %82 : vector<16xf32> to vector<16x1xf32>
    %84 = tpu.reciprocal %83 {approx = true} : vector<16x1xf32> -> vector<16x1xf32>
    %85 = vector.broadcast %84 : vector<16x1xf32> to vector<16x3xf32>
    %86 = arith.mulf %81, %85 : vector<16x3xf32>
    %cst_46 = arith.constant dense<0.000000e+00> : vector<16x3xf32>
    %87 = tpu.matmul %86, %73, %cst_46 {dimension_numbers = #tpu.dot_dimension_numbers<[1], [0], [0], [1], [0, 0, 1, 1], [], []>} : vector<16x3xf32>, vector<3x3xf32>, vector<16x3xf32> -> vector<16x3xf32>
    %88 = vector.extract_strided_slice %68 {offsets = [0, 0], sizes = [8, 3], strides = [1, 1]} : vector<8x6xf32> to vector<8x3xf32>
    %89 = vector.extract_strided_slice %68 {offsets = [0, 3], sizes = [8, 3], strides = [1, 1]} : vector<8x6xf32> to vector<8x3xf32>
    %cst_47 = arith.constant dense<0.000000e+00> : vector<16x8xf32>
    %90 = tpu.matmul %71, %88, %cst_47 {dimension_numbers = #tpu.dot_dimension_numbers<[1], [1], [0], [0], [0, 0, 1, 0], [], []>} : vector<16x3xf32>, vector<8x3xf32>, vector<16x8xf32> -> vector<16x8xf32>
    %cst_48 = arith.constant 0.577350259 : f32
    %91 = vector.broadcast %cst_48 : f32 to vector<16x8xf32>
    %92 = arith.mulf %90, %91 : vector<16x8xf32>
    %cst_49 = arith.constant dense<0xFF800000> : vector<16xf32>
    %93 = vector.multi_reduction <maximumf>, %92, %cst_49 [1] : vector<16x8xf32> to vector<16xf32>
    %94 = vector.shape_cast %93 : vector<16xf32> to vector<16x1xf32>
    %95 = vector.broadcast %94 : vector<16x1xf32> to vector<16x8xf32>
    %96 = arith.subf %92, %95 : vector<16x8xf32>
    %97 = math.exp %96 : vector<16x8xf32>
    %cst_50 = arith.constant dense<0.000000e+00> : vector<16xf32>
    %98 = vector.multi_reduction <add>, %97, %cst_50 [1] : vector<16x8xf32> to vector<16xf32>
    %99 = vector.shape_cast %98 : vector<16xf32> to vector<16x1xf32>
    %100 = tpu.reciprocal %99 {approx = true} : vector<16x1xf32> -> vector<16x1xf32>
    %101 = vector.broadcast %100 : vector<16x1xf32> to vector<16x8xf32>
    %102 = arith.mulf %97, %101 : vector<16x8xf32>
    %cst_51 = arith.constant dense<0.000000e+00> : vector<16x3xf32>
    %103 = tpu.matmul %102, %89, %cst_51 {dimension_numbers = #tpu.dot_dimension_numbers<[1], [0], [0], [1], [0, 0, 1, 1], [], []>} : vector<16x8xf32>, vector<8x3xf32>, vector<16x3xf32> -> vector<16x3xf32>
    %cst_52 = arith.constant dense<0.000000e+00> : vector<16xf32>
    %104 = vector.multi_reduction <add>, %87, %cst_52 [1] : vector<16x3xf32> to vector<16xf32>
    %105 = vector.shape_cast %104 : vector<16xf32> to vector<16x1xf32>
    %cst_53 = arith.constant dense<0.000000e+00> : vector<16xf32>
    %106 = vector.multi_reduction <add>, %103, %cst_53 [1] : vector<16x3xf32> to vector<16xf32>
    %107 = vector.shape_cast %106 : vector<16xf32> to vector<16x1xf32>
    %108 = arith.addf %105, %107 : vector<16x1xf32>
    %cst_54 = arith.constant 0.166666672 : f32
    %109 = vector.broadcast %cst_54 : f32 to vector<16x1xf32>
    %110 = arith.mulf %108, %109 : vector<16x1xf32>
    %111 = vector.broadcast %110 : vector<16x1xf32> to vector<16x3xf32>
    %112 = arith.subf %87, %111 : vector<16x3xf32>
    %113 = vector.broadcast %110 : vector<16x1xf32> to vector<16x3xf32>
    %114 = arith.subf %103, %113 : vector<16x3xf32>
    %115 = arith.mulf %112, %112 : vector<16x3xf32>
    %cst_55 = arith.constant dense<0.000000e+00> : vector<16xf32>
    %116 = vector.multi_reduction <add>, %115, %cst_55 [1] : vector<16x3xf32> to vector<16xf32>
    %117 = vector.shape_cast %116 : vector<16xf32> to vector<16x1xf32>
    %118 = arith.mulf %114, %114 : vector<16x3xf32>
    %cst_56 = arith.constant dense<0.000000e+00> : vector<16xf32>
    %119 = vector.multi_reduction <add>, %118, %cst_56 [1] : vector<16x3xf32> to vector<16xf32>
    %120 = vector.shape_cast %119 : vector<16xf32> to vector<16x1xf32>
    %121 = arith.addf %117, %120 : vector<16x1xf32>
    %cst_57 = arith.constant 0.166666672 : f32
    %122 = vector.broadcast %cst_57 : f32 to vector<16x1xf32>
    %123 = arith.mulf %121, %122 : vector<16x1xf32>
    %cst_58 = arith.constant 9.99999974E-6 : f32
    %124 = vector.broadcast %cst_58 : f32 to vector<16x1xf32>
    %125 = arith.addf %123, %124 : vector<16x1xf32>
    %126 = math.rsqrt %125 : vector<16x1xf32>
    %127 = vector.broadcast %126 : vector<16x1xf32> to vector<16x3xf32>
    %128 = arith.mulf %112, %127 : vector<16x3xf32>
    %cst_59 = arith.constant dense<0.000000e+00> : vector<16x6xf32>
    %129 = tpu.matmul %128, %60, %cst_59 {dimension_numbers = #tpu.dot_dimension_numbers<[1], [0], [0], [1], [0, 0, 1, 1], [], []>} : vector<16x3xf32>, vector<3x6xf32>, vector<16x6xf32> -> vector<16x6xf32>
    %130 = vector.broadcast %126 : vector<16x1xf32> to vector<16x3xf32>
    %131 = arith.mulf %114, %130 : vector<16x3xf32>
    %cst_60 = arith.constant dense<0.000000e+00> : vector<16x6xf32>
    %132 = tpu.matmul %131, %61, %cst_60 {dimension_numbers = #tpu.dot_dimension_numbers<[1], [0], [0], [1], [0, 0, 1, 1], [], []>} : vector<16x3xf32>, vector<3x6xf32>, vector<16x6xf32> -> vector<16x6xf32>
    %133 = arith.addf %129, %132 : vector<16x6xf32>
    %134 = vector.broadcast %62 : vector<1x6xf32> to vector<16x6xf32>
    %135 = arith.addf %133, %134 : vector<16x6xf32>
    %136 = vector.extract_strided_slice %53 {offsets = [1, 0, 0], sizes = [1, 3, 6], strides = [1, 1, 1]} : vector<2x3x6xf32> to vector<1x3x6xf32>
    %137 = vector.shape_cast %136 : vector<1x3x6xf32> to vector<3x6xf32>
    %cst_61 = arith.constant dense<0.000000e+00> : vector<3x6xf32>
    %138 = tpu.matmul %137, %57, %cst_61 {dimension_numbers = #tpu.dot_dimension_numbers<[1], [0], [0], [1], [0, 0, 1, 1], [], []>} : vector<3x6xf32>, vector<6x6xf32>, vector<3x6xf32> -> vector<3x6xf32>
    %139 = vector.extract_strided_slice %56 {offsets = [1, 0, 0], sizes = [1, 8, 6], strides = [1, 1, 1]} : vector<2x8x6xf32> to vector<1x8x6xf32>
    %140 = vector.shape_cast %139 : vector<1x8x6xf32> to vector<8x6xf32>
    %cst_62 = arith.constant dense<0.000000e+00> : vector<8x6xf32>
    %141 = tpu.matmul %140, %58, %cst_62 {dimension_numbers = #tpu.dot_dimension_numbers<[1], [0], [0], [1], [0, 0, 1, 1], [], []>} : vector<8x6xf32>, vector<6x6xf32>, vector<8x6xf32> -> vector<8x6xf32>
    %142 = vector.extract_strided_slice %0 {offsets = [1, 0, 0], sizes = [1, 16, 6], strides = [1, 1, 1]} : vector<2x16x6xf32> to vector<1x16x6xf32>
    %143 = vector.shape_cast %142 : vector<1x16x6xf32> to vector<16x6xf32>
    %cst_63 = arith.constant dense<0.000000e+00> : vector<16x3xf32>
    %144 = tpu.matmul %143, %59, %cst_63 {dimension_numbers = #tpu.dot_dimension_numbers<[1], [0], [0], [1], [0, 0, 1, 1], [], []>} : vector<16x6xf32>, vector<6x3xf32>, vector<16x3xf32> -> vector<16x3xf32>
    %145 = vector.extract_strided_slice %138 {offsets = [0, 0], sizes = [3, 3], strides = [1, 1]} : vector<3x6xf32> to vector<3x3xf32>
    %146 = vector.extract_strided_slice %138 {offsets = [0, 3], sizes = [3, 3], strides = [1, 1]} : vector<3x6xf32> to vector<3x3xf32>
    %cst_64 = arith.constant dense<0.000000e+00> : vector<16x3xf32>
    %147 = tpu.matmul %144, %145, %cst_64 {dimension_numbers = #tpu.dot_dimension_numbers<[1], [1], [0], [0], [0, 0, 1, 0], [], []>} : vector<16x3xf32>, vector<3x3xf32>, vector<16x3xf32> -> vector<16x3xf32>
    %cst_65 = arith.constant 0.577350259 : f32
    %148 = vector.broadcast %cst_65 : f32 to vector<16x3xf32>
    %149 = arith.mulf %147, %148 : vector<16x3xf32>
    %cst_66 = arith.constant dense<0xFF800000> : vector<16xf32>
    %150 = vector.multi_reduction <maximumf>, %149, %cst_66 [1] : vector<16x3xf32> to vector<16xf32>
    %151 = vector.shape_cast %150 : vector<16xf32> to vector<16x1xf32>
    %152 = vector.broadcast %151 : vector<16x1xf32> to vector<16x3xf32>
    %153 = arith.subf %149, %152 : vector<16x3xf32>
    %154 = math.exp %153 : vector<16x3xf32>
    %cst_67 = arith.constant dense<0.000000e+00> : vector<16xf32>
    %155 = vector.multi_reduction <add>, %154, %cst_67 [1] : vector<16x3xf32> to vector<16xf32>
    %156 = vector.shape_cast %155 : vector<16xf32> to vector<16x1xf32>
    %157 = tpu.reciprocal %156 {approx = true} : vector<16x1xf32> -> vector<16x1xf32>
    %158 = vector.broadcast %157 : vector<16x1xf32> to vector<16x3xf32>
    %159 = arith.mulf %154, %158 : vector<16x3xf32>
    %cst_68 = arith.constant dense<0.000000e+00> : vector<16x3xf32>
    %160 = tpu.matmul %159, %146, %cst_68 {dimension_numbers = #tpu.dot_dimension_numbers<[1], [0], [0], [1], [0, 0, 1, 1], [], []>} : vector<16x3xf32>, vector<3x3xf32>, vector<16x3xf32> -> vector<16x3xf32>
    %161 = vector.extract_strided_slice %141 {offsets = [0, 0], sizes = [8, 3], strides = [1, 1]} : vector<8x6xf32> to vector<8x3xf32>
    %162 = vector.extract_strided_slice %141 {offsets = [0, 3], sizes = [8, 3], strides = [1, 1]} : vector<8x6xf32> to vector<8x3xf32>
    %cst_69 = arith.constant dense<0.000000e+00> : vector<16x8xf32>
    %163 = tpu.matmul %144, %161, %cst_69 {dimension_numbers = #tpu.dot_dimension_numbers<[1], [1], [0], [0], [0, 0, 1, 0], [], []>} : vector<16x3xf32>, vector<8x3xf32>, vector<16x8xf32> -> vector<16x8xf32>
    %cst_70 = arith.constant 0.577350259 : f32
    %164 = vector.broadcast %cst_70 : f32 to vector<16x8xf32>
    %165 = arith.mulf %163, %164 : vector<16x8xf32>
    %cst_71 = arith.constant dense<0xFF800000> : vector<16xf32>
    %166 = vector.multi_reduction <maximumf>, %165, %cst_71 [1] : vector<16x8xf32> to vector<16xf32>
    %167 = vector.shape_cast %166 : vector<16xf32> to vector<16x1xf32>
    %168 = vector.broadcast %167 : vector<16x1xf32> to vector<16x8xf32>
    %169 = arith.subf %165, %168 : vector<16x8xf32>
    %170 = math.exp %169 : vector<16x8xf32>
    %cst_72 = arith.constant dense<0.000000e+00> : vector<16xf32>
    %171 = vector.multi_reduction <add>, %170, %cst_72 [1] : vector<16x8xf32> to vector<16xf32>
    %172 = vector.shape_cast %171 : vector<16xf32> to vector<16x1xf32>
    %173 = tpu.reciprocal %172 {approx = true} : vector<16x1xf32> -> vector<16x1xf32>
    %174 = vector.broadcast %173 : vector<16x1xf32> to vector<16x8xf32>
    %175 = arith.mulf %170, %174 : vector<16x8xf32>
    %cst_73 = arith.constant dense<0.000000e+00> : vector<16x3xf32>
    %176 = tpu.matmul %175, %162, %cst_73 {dimension_numbers = #tpu.dot_dimension_numbers<[1], [0], [0], [1], [0, 0, 1, 1], [], []>} : vector<16x8xf32>, vector<8x3xf32>, vector<16x3xf32> -> vector<16x3xf32>
    %cst_74 = arith.constant dense<0.000000e+00> : vector<16xf32>
    %177 = vector.multi_reduction <add>, %160, %cst_74 [1] : vector<16x3xf32> to vector<16xf32>
    %178 = vector.shape_cast %177 : vector<16xf32> to vector<16x1xf32>
    %cst_75 = arith.constant dense<0.000000e+00> : vector<16xf32>
    %179 = vector.multi_reduction <add>, %176, %cst_75 [1] : vector<16x3xf32> to vector<16xf32>
    %180 = vector.shape_cast %179 : vector<16xf32> to vector<16x1xf32>
    %181 = arith.addf %178, %180 : vector<16x1xf32>
    %cst_76 = arith.constant 0.166666672 : f32
    %182 = vector.broadcast %cst_76 : f32 to vector<16x1xf32>
    %183 = arith.mulf %181, %182 : vector<16x1xf32>
    %184 = vector.broadcast %183 : vector<16x1xf32> to vector<16x3xf32>
    %185 = arith.subf %160, %184 : vector<16x3xf32>
    %186 = vector.broadcast %183 : vector<16x1xf32> to vector<16x3xf32>
    %187 = arith.subf %176, %186 : vector<16x3xf32>
    %188 = arith.mulf %185, %185 : vector<16x3xf32>
    %cst_77 = arith.constant dense<0.000000e+00> : vector<16xf32>
    %189 = vector.multi_reduction <add>, %188, %cst_77 [1] : vector<16x3xf32> to vector<16xf32>
    %190 = vector.shape_cast %189 : vector<16xf32> to vector<16x1xf32>
    %191 = arith.mulf %187, %187 : vector<16x3xf32>
    %cst_78 = arith.constant dense<0.000000e+00> : vector<16xf32>
    %192 = vector.multi_reduction <add>, %191, %cst_78 [1] : vector<16x3xf32> to vector<16xf32>
    %193 = vector.shape_cast %192 : vector<16xf32> to vector<16x1xf32>
    %194 = arith.addf %190, %193 : vector<16x1xf32>
    %cst_79 = arith.constant 0.166666672 : f32
    %195 = vector.broadcast %cst_79 : f32 to vector<16x1xf32>
    %196 = arith.mulf %194, %195 : vector<16x1xf32>
    %cst_80 = arith.constant 9.99999974E-6 : f32
    %197 = vector.broadcast %cst_80 : f32 to vector<16x1xf32>
    %198 = arith.addf %196, %197 : vector<16x1xf32>
    %199 = math.rsqrt %198 : vector<16x1xf32>
    %200 = vector.broadcast %199 : vector<16x1xf32> to vector<16x3xf32>
    %201 = arith.mulf %185, %200 : vector<16x3xf32>
    %cst_81 = arith.constant dense<0.000000e+00> : vector<16x6xf32>
    %202 = tpu.matmul %201, %60, %cst_81 {dimension_numbers = #tpu.dot_dimension_numbers<[1], [0], [0], [1], [0, 0, 1, 1], [], []>} : vector<16x3xf32>, vector<3x6xf32>, vector<16x6xf32> -> vector<16x6xf32>
    %203 = vector.broadcast %199 : vector<16x1xf32> to vector<16x3xf32>
    %204 = arith.mulf %187, %203 : vector<16x3xf32>
    %cst_82 = arith.constant dense<0.000000e+00> : vector<16x6xf32>
    %205 = tpu.matmul %204, %61, %cst_82 {dimension_numbers = #tpu.dot_dimension_numbers<[1], [0], [0], [1], [0, 0, 1, 1], [], []>} : vector<16x3xf32>, vector<3x6xf32>, vector<16x6xf32> -> vector<16x6xf32>
    %206 = arith.addf %202, %205 : vector<16x6xf32>
    %207 = vector.broadcast %62 : vector<1x6xf32> to vector<16x6xf32>
    %208 = arith.addf %206, %207 : vector<16x6xf32>
    %cst_83 = arith.constant dense<0.000000e+00> : vector<6xf32>
    %209 = vector.multi_reduction <add>, %135, %cst_83 [0] : vector<16x6xf32> to vector<6xf32>
    %210 = vector.shape_cast %209 : vector<6xf32> to vector<1x6xf32>
    %cst_84 = arith.constant 0.000000e+00 : f32
    %211 = vector.broadcast %cst_84 : f32 to vector<1x6xf32>
    %212 = arith.addf %211, %210 : vector<1x6xf32>
    %cst_85 = arith.constant dense<0.000000e+00> : vector<6xf32>
    %213 = vector.multi_reduction <add>, %208, %cst_85 [0] : vector<16x6xf32> to vector<6xf32>
    %214 = vector.shape_cast %213 : vector<6xf32> to vector<1x6xf32>
    %215 = arith.addf %212, %214 : vector<1x6xf32>
    %cst_86 = arith.constant 3.125000e-02 : f32
    %216 = vector.broadcast %cst_86 : f32 to vector<1x6xf32>
    %217 = arith.mulf %215, %216 : vector<1x6xf32>
    %218 = vector.broadcast %217 : vector<1x6xf32> to vector<16x6xf32>
    %219 = arith.subf %135, %218 : vector<16x6xf32>
    %220 = arith.mulf %219, %219 : vector<16x6xf32>
    %cst_87 = arith.constant dense<0.000000e+00> : vector<6xf32>
    %221 = vector.multi_reduction <add>, %220, %cst_87 [0] : vector<16x6xf32> to vector<6xf32>
    %222 = vector.shape_cast %221 : vector<6xf32> to vector<1x6xf32>
    %cst_88 = arith.constant 0.000000e+00 : f32
    %223 = vector.broadcast %cst_88 : f32 to vector<1x6xf32>
    %224 = arith.addf %223, %222 : vector<1x6xf32>
    %225 = vector.broadcast %217 : vector<1x6xf32> to vector<16x6xf32>
    %226 = arith.subf %208, %225 : vector<16x6xf32>
    %227 = arith.mulf %226, %226 : vector<16x6xf32>
    %cst_89 = arith.constant dense<0.000000e+00> : vector<6xf32>
    %228 = vector.multi_reduction <add>, %227, %cst_89 [0] : vector<16x6xf32> to vector<6xf32>
    %229 = vector.shape_cast %228 : vector<6xf32> to vector<1x6xf32>
    %230 = arith.addf %224, %229 : vector<1x6xf32>
    %cst_90 = arith.constant 3.125000e-02 : f32
    %231 = vector.broadcast %cst_90 : f32 to vector<1x6xf32>
    %232 = arith.mulf %230, %231 : vector<1x6xf32>
    %cst_91 = arith.constant 9.99999974E-6 : f32
    %233 = vector.broadcast %cst_91 : f32 to vector<1x6xf32>
    %234 = arith.addf %232, %233 : vector<1x6xf32>
    %235 = math.rsqrt %234 : vector<1x6xf32>
    %c0_92 = arith.constant 0 : index
    %c0_93 = arith.constant 0 : index
    %236 = vector.load %arg13[%c0_92, %c0_93] : memref<1x6xf32, #tpu.memory_space<vmem>>, vector<1x6xf32>
    %237 = arith.mulf %235, %236 : vector<1x6xf32>
    %c0_94 = arith.constant 0 : index
    %c0_95 = arith.constant 0 : index
    %238 = vector.load %arg14[%c0_94, %c0_95] : memref<1x6xf32, #tpu.memory_space<vmem>>, vector<1x6xf32>
    %239 = vector.extract_strided_slice %0 {offsets = [0, 0, 0], sizes = [1, 16, 6], strides = [1, 1, 1]} : vector<2x16x6xf32> to vector<1x16x6xf32>
    %240 = vector.shape_cast %239 : vector<1x16x6xf32> to vector<16x6xf32>
    %241 = vector.broadcast %217 : vector<1x6xf32> to vector<16x6xf32>
    %242 = arith.subf %135, %241 : vector<16x6xf32>
    %243 = vector.broadcast %237 : vector<1x6xf32> to vector<16x6xf32>
    %244 = arith.mulf %242, %243 : vector<16x6xf32>
    %245 = arith.addf %240, %244 : vector<16x6xf32>
    %246 = vector.broadcast %238 : vector<1x6xf32> to vector<16x6xf32>
    %247 = arith.addf %245, %246 : vector<16x6xf32>
    %cst_96 = arith.constant 0.000000e+00 : f32
    %248 = vector.broadcast %cst_96 : f32 to vector<16x6xf32>
    %249 = arith.cmpf oge, %247, %248 : vector<16x6xf32>
    %cst_97 = arith.constant 2.000000e-01 : f32
    %250 = vector.broadcast %cst_97 : f32 to vector<16x6xf32>
    %251 = arith.mulf %250, %247 : vector<16x6xf32>
    %252 = arith.select %249, %247, %251 : vector<16x6xi1>, vector<16x6xf32>
    %c0_98 = arith.constant 0 : index
    %c0_99 = arith.constant 0 : index
    %c0_100 = arith.constant 0 : index
    %253 = vector.load %arg15[%c0_98, %c0_99, %c0_100] : memref<2x16x6xf32, #tpu.memory_space<vmem>>, vector<1x16x6xf32>
    %254 = vector.shape_cast %253 : vector<1x16x6xf32> to vector<16x6xf32>
    %255 = vector.shape_cast %252 : vector<16x6xf32> to vector<1x16x6xf32>
    tpu.vector_store %arg15[%c0_98, %c0_99, %c0_100], %255 {strides = array<i32>} : memref<2x16x6xf32, #tpu.memory_space<vmem>>, vector<1x16x6xf32>,
    %256 = vector.extract_strided_slice %0 {offsets = [1, 0, 0], sizes = [1, 16, 6], strides = [1, 1, 1]} : vector<2x16x6xf32> to vector<1x16x6xf32>
    %257 = vector.shape_cast %256 : vector<1x16x6xf32> to vector<16x6xf32>
    %258 = vector.broadcast %217 : vector<1x6xf32> to vector<16x6xf32>
    %259 = arith.subf %208, %258 : vector<16x6xf32>
    %260 = vector.broadcast %237 : vector<1x6xf32> to vector<16x6xf32>
    %261 = arith.mulf %259, %260 : vector<16x6xf32>
    %262 = arith.addf %257, %261 : vector<16x6xf32>
    %263 = vector.broadcast %238 : vector<1x6xf32> to vector<16x6xf32>
    %264 = arith.addf %262, %263 : vector<16x6xf32>
    %cst_101 = arith.constant 0.000000e+00 : f32
    %265 = vector.broadcast %cst_101 : f32 to vector<16x6xf32>
    %266 = arith.cmpf oge, %264, %265 : vector<16x6xf32>
    %cst_102 = arith.constant 2.000000e-01 : f32
    %267 = vector.broadcast %cst_102 : f32 to vector<16x6xf32>
    %268 = arith.mulf %267, %264 : vector<16x6xf32>
    %269 = arith.select %266, %264, %268 : vector<16x6xi1>, vector<16x6xf32>
    %c1 = arith.constant 1 : index
    %c0_103 = arith.constant 0 : index
    %c0_104 = arith.constant 0 : index
    %270 = vector.load %arg15[%c1, %c0_103, %c0_104] : memref<2x16x6xf32, #tpu.memory_space<vmem>>, vector<1x16x6xf32>
    %271 = vector.shape_cast %270 : vector<1x16x6xf32> to vector<16x6xf32>
    %272 = vector.shape_cast %269 : vector<16x6xf32> to vector<1x16x6xf32>
    tpu.vector_store %arg15[%c1, %c0_103, %c0_104], %272 {strides = array<i32>} : memref<2x16x6xf32, #tpu.memory_space<vmem>>, vector<1x16x6xf32>,
    return
  }
}

</mosaic_0001>

<llo_original>
// kernel: kpc_fu_forward.1
$region0: #{kpc_fu_forward.1}
  #allocation0 [shape = 'u32[]', space=smem, size = 0x4, offset = 0x4, fixed_abs, tag = 'smem constant byte address 0x4 - core index']
  #allocation1 [shape = 'u32[144,128]{1,0:T(1,128)}', space=vmem, size = 0x12000, scoped, tag = 'internal scratch']
  %s0 = inlined_call_operand.vmem [shape: f32[2,16,6], index: 0, kind: input, shape index: {}]
  %s1 = inlined_call_operand.vmem [shape: f32[2,3,8,6], index: 1, kind: input, shape index: {}]
  %s2 = inlined_call_operand.vmem [shape: f32[1,6], index: 2, kind: input, shape index: {}]
  %s3 = inlined_call_operand.vmem [shape: f32[3,3], index: 3, kind: input, shape index: {}]
  %s4 = inlined_call_operand.vmem [shape: f32[3,1], index: 4, kind: input, shape index: {}]
  %s5 = inlined_call_operand.vmem [shape: f32[3,1,6], index: 5, kind: input, shape index: {}]
  %s6 = inlined_call_operand.vmem [shape: f32[1,6], index: 6, kind: input, shape index: {}]
  %s7 = inlined_call_operand.vmem [shape: f32[6,6], index: 7, kind: input, shape index: {}]
  %s8 = inlined_call_operand.vmem [shape: f32[6,6], index: 8, kind: input, shape index: {}]
  %s9 = inlined_call_operand.vmem [shape: f32[6,3], index: 9, kind: input, shape index: {}]
  %s10 = inlined_call_operand.vmem [shape: f32[3,6], index: 10, kind: input, shape index: {}]
  %s11 = inlined_call_operand.vmem [shape: f32[3,6], index: 11, kind: input, shape index: {}]
  %s12 = inlined_call_operand.vmem [shape: f32[1,6], index: 12, kind: input, shape index: {}]
  %s13 = inlined_call_operand.vmem [shape: f32[1,6], index: 13, kind: input, shape index: {}]
  %s14 = inlined_call_operand.vmem [shape: f32[1,6], index: 14, kind: input, shape index: {}]
  %s15 = inlined_call_operand.vmem [shape: f32[2,16,6], index: 15, kind: output, shape index: {}]
  %s16 = sld [smem:[#allocation0]]
  $region70: #{kpc_fu_forward.1} parent=0
    _
  %s18 = ssub.s32 1, %s16
  %s19 = scalar_select 0, %s18, %s16
  // Predicated region
  $region2: #{kpc_fu_forward.1} parent=0 // pred_check
    _
  $region3: #{kpc_fu_forward.1} parent=0 // pred_check_branch
    %21 = sbr.rel (0) target = $region5
  $region4: #{kpc_fu_forward.1} parent=0 // pred_region
    _
  $region5: #{kpc_fu_forward.1} parent=0 // pred_fallthru
    _
  // Predicated region
  $region6: #{kpc_fu_forward.1} parent=0 // pred_check
    _
  $region7: #{kpc_fu_forward.1} parent=0 // pred_check_branch
    %23 = sbr.rel (0) target = $region9
  $region8: #{kpc_fu_forward.1} parent=0 // pred_region
    _
  $region9: #{kpc_fu_forward.1} parent=0 // pred_fallthru
    _
  // Predicated region
  $region10: #{kpc_fu_forward.1} parent=0 // pred_check
    _
  $region11: #{kpc_fu_forward.1} parent=0 // pred_check_branch
    %25 = sbr.rel (0) target = $region13
  $region12: #{kpc_fu_forward.1} parent=0 // pred_region
    _
  $region13: #{kpc_fu_forward.1} parent=0 // pred_fallthru
    _
  // Predicated region
  $region14: #{kpc_fu_forward.1} parent=0 // pred_check
    _
  $region15: #{kpc_fu_forward.1} parent=0 // pred_check_branch
    %27 = sbr.rel (0) target = $region17
  $region16: #{kpc_fu_forward.1} parent=0 // pred_region
    _
  $region17: #{kpc_fu_forward.1} parent=0 // pred_fallthru
    _
  // Predicated region
  $region18: #{kpc_fu_forward.1} parent=0 // pred_check
    _
  $region19: #{kpc_fu_forward.1} parent=0 // pred_check_branch
    %29 = sbr.rel (0) target = $region21
  $region20: #{kpc_fu_forward.1} parent=0 // pred_region
    _
  $region21: #{kpc_fu_forward.1} parent=0 // pred_fallthru
    _
  // Predicated region
  $region22: #{kpc_fu_forward.1} parent=0 // pred_check
    _
  $region23: #{kpc_fu_forward.1} parent=0 // pred_check_branch
    %31 = sbr.rel (0) target = $region25
  $region24: #{kpc_fu_forward.1} parent=0 // pred_region
    _
  $region25: #{kpc_fu_forward.1} parent=0 // pred_fallthru
    _
  // Predicated region
  $region26: #{kpc_fu_forward.1} parent=0 // pred_check
    _
  $region27: #{kpc_fu_forward.1} parent=0 // pred_check_branch
    %33 = sbr.rel (0) target = $region29
  $region28: #{kpc_fu_forward.1} parent=0 // pred_region
    _
  $region29: #{kpc_fu_forward.1} parent=0 // pred_fallthru
    _
  // Predicated region
  $region30: #{kpc_fu_forward.1} parent=0 // pred_check
    _
  $region31: #{kpc_fu_forward.1} parent=0 // pred_check_branch
    %35 = sbr.rel (0) target = $region33
  $region32: #{kpc_fu_forward.1} parent=0 // pred_region
    _
  $region33: #{kpc_fu_forward.1} parent=0 // pred_fallthru
    _
  // Predicated region
  $region34: #{kpc_fu_forward.1} parent=0 // pred_check
    _
  $region35: #{kpc_fu_forward.1} parent=0 // pred_check_branch
    %37 = sbr.rel (0) target = $region37
  $region36: #{kpc_fu_forward.1} parent=0 // pred_region
    _
  $region37: #{kpc_fu_forward.1} parent=0 // pred_fallthru
    _
  // Predicated region
  $region38: #{kpc_fu_forward.1} parent=0 // pred_check
    _
  $region39: #{kpc_fu_forward.1} parent=0 // pred_check_branch
    %39 = sbr.rel (0) target = $region41
  $region40: #{kpc_fu_forward.1} parent=0 // pred_region
    _
  $region41: #{kpc_fu_forward.1} parent=0 // pred_fallthru
    _
  // Predicated region
  $region42: #{kpc_fu_forward.1} parent=0 // pred_check
    _
  $region43: #{kpc_fu_forward.1} parent=0 // pred_check_branch
    %41 = sbr.rel (0) target = $region45
  $region44: #{kpc_fu_forward.1} parent=0 // pred_region
    _
  $region45: #{kpc_fu_forward.1} parent=0 // pred_fallthru
    _
  // Predicated region
  $region46: #{kpc_fu_forward.1} parent=0 // pred_check
    _
  $region47: #{kpc_fu_forward.1} parent=0 // pred_check_branch
    %43 = sbr.rel (0) target = $region49
  $region48: #{kpc_fu_forward.1} parent=0 // pred_region
    _
  $region49: #{kpc_fu_forward.1} parent=0 // pred_fallthru
    _
  // Predicated region
  $region50: #{kpc_fu_forward.1} parent=0 // pred_check
    _
  $region51: #{kpc_fu_forward.1} parent=0 // pred_check_branch
    %45 = sbr.rel (0) target = $region53
  $region52: #{kpc_fu_forward.1} parent=0 // pred_region
    _
  $region53: #{kpc_fu_forward.1} parent=0 // pred_fallthru
    _
  // Predicated region
  $region54: #{kpc_fu_forward.1} parent=0 // pred_check
    _
  $region55: #{kpc_fu_forward.1} parent=0 // pred_check_branch
    %47 = sbr.rel (0) target = $region57
  $region56: #{kpc_fu_forward.1} parent=0 // pred_region
    _
  $region57: #{kpc_fu_forward.1} parent=0 // pred_fallthru
    _
  // Predicated region
  $region58: #{kpc_fu_forward.1} parent=0 // pred_check
    _
  $region59: #{kpc_fu_forward.1} parent=0 // pred_check_branch
    %49 = sbr.rel (0) target = $region61
  $region60: #{kpc_fu_forward.1} parent=0 // pred_region
    _
  $region61: #{kpc_fu_forward.1} parent=0 // pred_fallthru
    _
  %v50 = vld [vmem:[%s0] sm:$0xff]
  %v51 = vld [vmem:[%s0 + $0x8] sm:$0xff]
  %v52 = vld [vmem:[%s0 + $0x10] sm:$0xff]
  %v53 = vld [vmem:[%s0 + $0x18] sm:$0xff]
  %v54 = vld [vmem:[%s1] sm:$0xff]
  %v55 = vld [vmem:[%s1 + $0x8] sm:$0xff]
  %v56 = vld [vmem:[%s1 + $0x10] sm:$0xff]
  %v57 = vld [vmem:[%s1 + $0x18] sm:$0xff]
  %v58 = vld [vmem:[%s1 + $0x20] sm:$0xff]
  %v59 = vld [vmem:[%s1 + $0x28] sm:$0xff]
  %v60 = vld [vmem:[%s2] sm:$0x1]
  %v62 = vlaneseq
  %v63 = vshrl.u32 %v62, 7
  %v64 = vsub.s32 0, %v63
  %v65 = vrot.slane %v60, %v64
  %v67 = vmul.f32 %v54, %v65
  %v68 = vmul.f32 %v55, %v65
  %v69 = vmul.f32 %v56, %v65
  %v70 = vmul.f32 %v57, %v65
  %v71 = vmul.f32 %v58, %v65
  %v72 = vmul.f32 %v59, %v65
  %vm73 = vcmask 48128
  %v74 = vsel %vm73, %v67, 0.0
  %75 = vadd.xlane.f32.xlu0 %v74
  %v76 = vpop.xlane.xlu0 %75
  %v77 = vsel %vm73, %v68, 0.0
  %78 = vadd.xlane.f32.xlu0 %v77
  %v79 = vpop.xlane.xlu0 %78
  %v80 = vsel %vm73, %v69, 0.0
  %81 = vadd.xlane.f32.xlu0 %v80
  %v82 = vpop.xlane.xlu0 %81
  %v83 = vsel %vm73, %v70, 0.0
  %84 = vadd.xlane.f32.xlu0 %v83
  %v85 = vpop.xlane.xlu0 %84
  %v86 = vsel %vm73, %v71, 0.0
  %87 = vadd.xlane.f32.xlu0 %v86
  %v88 = vpop.xlane.xlu0 %87
  %v89 = vsel %vm73, %v72, 0.0
  %90 = vadd.xlane.f32.xlu0 %v89
  %v91 = vpop.xlane.xlu0 %90
  %v92 = vrot.slane %v76, 4
  %v93 = vmax.f32 %v76, %v92
  %v94 = vrot.slane %v93, 2
  %v95 = vmax.f32 %v93, %v94
  %v96 = vrot.slane %v95, 1
  %v97 = vmax.f32 %v95, %v96
  %v98 = vrot.slane %v79, 4
  %v99 = vmax.f32 %v79, %v98
  %v100 = vrot.slane %v99, 2
  %v101 = vmax.f32 %v99, %v100
  %v102 = vrot.slane %v101, 1
  %v103 = vmax.f32 %v101, %v102
  %v104 = vrot.slane %v82, 4
  %v105 = vmax.f32 %v82, %v104
  %v106 = vrot.slane %v105, 2
  %v107 = vmax.f32 %v105, %v106
  %v108 = vrot.slane %v107, 1
  %v109 = vmax.f32 %v107, %v108
  %v110 = vrot.slane %v85, 4
  %v111 = vmax.f32 %v85, %v110
  %v112 = vrot.slane %v111, 2
  %v113 = vmax.f32 %v111, %v112
  %v114 = vrot.slane %v113, 1
  %v115 = vmax.f32 %v113, %v114
  %v116 = vrot.slane %v88, 4
  %v117 = vmax.f32 %v88, %v116
  %v118 = vrot.slane %v117, 2
  %v119 = vmax.f32 %v117, %v118
  %v120 = vrot.slane %v119, 1
  %v121 = vmax.f32 %v119, %v120
  %v122 = vrot.slane %v91, 4
  %v123 = vmax.f32 %v91, %v122
  %v124 = vrot.slane %v123, 2
  %v125 = vmax.f32 %v123, %v124
  %v126 = vrot.slane %v125, 1
  %v127 = vmax.f32 %v125, %v126
  %v128 = vsub.f32 %v76, %v97
  %v129 = vsub.f32 %v79, %v103
  %v130 = vsub.f32 %v82, %v109
  %v131 = vsub.f32 %v85, %v115
  %v132 = vsub.f32 %v88, %v121
  %v133 = vsub.f32 %v91, %v127
  %v134 = vmul.f32 %v128, 1.442695
  %v135 = vpow.pop %v134
  %v136 = vmul.f32 %v129, 1.442695
  %v137 = vpow.pop %v136
  %v138 = vmul.f32 %v130, 1.442695
  %v139 = vpow.pop %v138
  %v140 = vmul.f32 %v131, 1.442695
  %v141 = vpow.pop %v140
  %v142 = vmul.f32 %v132, 1.442695
  %v143 = vpow.pop %v142
  %v144 = vmul.f32 %v133, 1.442695
  %v145 = vpow.pop %v144
  %v146 = vrot.slane %v135, 4
  %v147 = vadd.f32 %v135, %v146
  %v148 = vrot.slane %v147, 2
  %v149 = vadd.f32 %v147, %v148
  %v150 = vrot.slane %v149, 1
  %v151 = vadd.f32 %v149, %v150
  %v152 = vrot.slane %v137, 4
  %v153 = vadd.f32 %v137, %v152
  %v154 = vrot.slane %v153, 2
  %v155 = vadd.f32 %v153, %v154
  %v156 = vrot.slane %v155, 1
  %v157 = vadd.f32 %v155, %v156
  %v158 = vrot.slane %v139, 4
  %v159 = vadd.f32 %v139, %v158
  %v160 = vrot.slane %v159, 2
  %v161 = vadd.f32 %v159, %v160
  %v162 = vrot.slane %v161, 1
  %v163 = vadd.f32 %v161, %v162
  %v164 = vrot.slane %v141, 4
  %v165 = vadd.f32 %v141, %v164
  %v166 = vrot.slane %v165, 2
  %v167 = vadd.f32 %v165, %v166
  %v168 = vrot.slane %v167, 1
  %v169 = vadd.f32 %v167, %v168
  %v170 = vrot.slane %v143, 4
  %v171 = vadd.f32 %v143, %v170
  %v172 = vrot.slane %v171, 2
  %v173 = vadd.f32 %v171, %v172
  %v174 = vrot.slane %v173, 1
  %v175 = vadd.f32 %v173, %v174
  %v176 = vrot.slane %v145, 4
  %v177 = vadd.f32 %v145, %v176
  %v178 = vrot.slane %v177, 2
  %v179 = vadd.f32 %v177, %v178
  %v180 = vrot.slane %v179, 1
  %v181 = vadd.f32 %v179, %v180
  %v182 = vrcp.pop %v151
  %v183 = vrcp.pop %v157
  %v184 = vrcp.pop %v163
  %v185 = vrcp.pop %v169
  %v186 = vrcp.pop %v175
  %v187 = vrcp.pop %v181
  %v188 = vmul.f32 %v135, %v182
  %v189 = vmul.f32 %v137, %v183
  %v190 = vmul.f32 %v139, %v184
  %v191 = vmul.f32 %v141, %v185
  %v192 = vmul.f32 %v143, %v186
  %v193 = vmul.f32 %v145, %v187
  %v194 = vmax.f32 %v76, %v82
  %v195 = vmax.f32 %v194, %v79
  %v196 = vmax.f32 %v85, %v91
  %v197 = vmax.f32 %v196, %v88
  %v198 = vsub.f32 %v76, %v195
  %v199 = vsub.f32 %v79, %v195
  %v200 = vsub.f32 %v82, %v195
  %v201 = vsub.f32 %v85, %v197
  %v202 = vsub.f32 %v88, %v197
  %v203 = vsub.f32 %v91, %v197
  %v204 = vmul.f32 %v198, 1.442695
  %v205 = vpow.pop %v204
  %v206 = vmul.f32 %v199, 1.442695
  %v207 = vpow.pop %v206
  %v208 = vmul.f32 %v200, 1.442695
  %v209 = vpow.pop %v208
  %v210 = vmul.f32 %v201, 1.442695
  %v211 = vpow.pop %v210
  %v212 = vmul.f32 %v202, 1.442695
  %v213 = vpow.pop %v212
  %v214 = vmul.f32 %v203, 1.442695
  %v215 = vpow.pop %v214
  %v216 = vadd.f32 %v205, %v207
  %v217 = vadd.f32 %v216, %v209
  %v218 = vadd.f32 %v211, %v213
  %v219 = vadd.f32 %v218, %v215
  %v220 = vrcp.pop %v217
  %v221 = vrcp.pop %v219
  %v222 = vmul.f32 %v205, %v220
  %v223 = vmul.f32 %v207, %v220
  %v224 = vmul.f32 %v209, %v220
  %v225 = vmul.f32 %v211, %v221
  %v226 = vmul.f32 %v213, %v221
  %v227 = vmul.f32 %v215, %v221
  %v228 = vmul.f32 %v54, %v188
  %v229 = vmul.f32 %v55, %v189
  %v230 = vmul.f32 %v56, %v190
  %v231 = vmul.f32 %v57, %v191
  %v232 = vmul.f32 %v58, %v192
  %v233 = vmul.f32 %v59, %v193
  %v234 = vsel %vm73, %v228, 0.0
  %v235 = vrot.slane %v234, 4
  %v236 = vadd.f32 %v234, %v235
  %v237 = vrot.slane %v236, 2
  %v238 = vadd.f32 %v236, %v237
  %v239 = vrot.slane %v238, 1
  %v240 = vadd.f32 %v238, %v239
  %v241 = vsel %vm73, %v229, 0.0
  %v242 = vrot.slane %v241, 4
  %v243 = vadd.f32 %v241, %v242
  %v244 = vrot.slane %v243, 2
  %v245 = vadd.f32 %v243, %v244
  %v246 = vrot.slane %v245, 1
  %v247 = vadd.f32 %v245, %v246
  %v248 = vsel %vm73, %v230, 0.0
  %v249 = vrot.slane %v248, 4
  %v250 = vadd.f32 %v248, %v249
  %v251 = vrot.slane %v250, 2
  %v252 = vadd.f32 %v250, %v251
  %v253 = vrot.slane %v252, 1
  %v254 = vadd.f32 %v252, %v253
  %v255 = vsel %vm73, %v231, 0.0
  %v256 = vrot.slane %v255, 4
  %v257 = vadd.f32 %v255, %v256
  %v258 = vrot.slane %v257, 2
  %v259 = vadd.f32 %v257, %v258
  %v260 = vrot.slane %v259, 1
  %v261 = vadd.f32 %v259, %v260
  %v262 = vsel %vm73, %v232, 0.0
  %v263 = vrot.slane %v262, 4
  %v264 = vadd.f32 %v262, %v263
  %v265 = vrot.slane %v264, 2
  %v266 = vadd.f32 %v264, %v265
  %v267 = vrot.slane %v266, 1
  %v268 = vadd.f32 %v266, %v267
  %v269 = vsel %vm73, %v233, 0.0
  %v270 = vrot.slane %v269, 4
  %v271 = vadd.f32 %v269, %v270
  %v272 = vrot.slane %v271, 2
  %v273 = vadd.f32 %v271, %v272
  %v274 = vrot.slane %v273, 1
  %v275 = vadd.f32 %v273, %v274
  %v276 = vmul.f32 %v54, %v222
  %v277 = vmul.f32 %v55, %v223
  %v278 = vmul.f32 %v56, %v224
  %v279 = vmul.f32 %v57, %v225
  %v280 = vmul.f32 %v58, %v226
  %v281 = vmul.f32 %v59, %v227
  %v282 = vsel %vm73, %v276, 0.0
  %v283 = vsel %vm73, %v277, 0.0
  %v284 = vadd.f32 %v282, %v283
  %v285 = vsel %vm73, %v278, 0.0
  %v286 = vadd.f32 %v284, %v285
  %v287 = vsel %vm73, %v279, 0.0
  %v288 = vsel %vm73, %v280, 0.0
  %v289 = vadd.f32 %v287, %v288
  %v290 = vsel %vm73, %v281, 0.0
  %v291 = vadd.f32 %v289, %v290
  %v292 = vsel %vm73, %v54, 0.0
  %v293 = vrot.slane %v292, 4
  %v294 = vadd.f32 %v292, %v293
  %v295 = vrot.slane %v294, 2
  %v296 = vadd.f32 %v294, %v295
  %v297 = vrot.slane %v296, 1
  %v298 = vadd.f32 %v296, %v297
  %v299 = vsel %vm73, %v55, 0.0
  %v300 = vrot.slane %v299, 4
  %v301 = vadd.f32 %v299, %v300
  %v302 = vrot.slane %v301, 2
  %v303 = vadd.f32 %v301, %v302
  %v304 = vrot.slane %v303, 1
  %v305 = vadd.f32 %v303, %v304
  %v306 = vsel %vm73, %v56, 0.0
  %v307 = vrot.slane %v306, 4
  %v308 = vadd.f32 %v306, %v307
  %v309 = vrot.slane %v308, 2
  %v310 = vadd.f32 %v308, %v309
  %v311 = vrot.slane %v310, 1
  %v312 = vadd.f32 %v310, %v311
  %v313 = vrcp.pop 8.0
  %v314 = vmul.f32 %v298, %v313
  %v315 = vmul.f32 %v305, %v313
  %v316 = vmul.f32 %v312, %v313
  %v317 = vld [vmem:[%s3] sm:$0x7]
  %v318 = vld [vmem:[%s4] sm:$0x7]
  %320 = vset.pattern.permute.xlu0 0
  %321 = vperm.xlu0 %320, %v318
  %v322 = vpop.permute.xlu0 %321
  %vm327 = vcmask 1041409
  %v328 = vsel %vm327, %v315, %v314
  %vm329 = vcmask 1042434
  %v330 = vsel %vm329, %v316, %v328
  %vm331 = vcmask 23552
  %v333 = vsel %vm331, %v317, 0
  %vm335 = vcmask 1042432
  %v336 = vsel %vm335, %v330, 0
  %338 = vmatprep.subr.mxu0 0.0
  %339 = vmatpush1.msra.mxu0 %v336
  %340 = vmatprep.subr.mxu0 0.0
  %341 = vmatpush1.msra.mxu0 0.0
  %342 = vmatprep.subr.mxu0 0.0
  %343 = vmatpush1.msra.mxu0 0.0
  %344 = vmatprep.subr.mxu0 0.0
  %345 = vmatpush1.msra.mxu0 0.0
  %346 = vmatprep.subr.mxu0 0.0
  %347 = vmatpush1.msra.mxu0 0.0
  %348 = vmatprep.subr.mxu0 0.0
  %349 = vmatpush1.msra.mxu0 0.0
  %350 = vmatprep.subr.mxu0 0.0
  %351 = vmatpush1.msra.mxu0 0.0
  %352 = vmatprep.subr.mxu0 0.0
  %353 = vmatpush1.msra.mxu0 0.0
  %354 = vmatprep.subr.mxu0 0.0
  %355 = vmatpush1.msra.mxu0 0.0
  %356 = vmatprep.subr.mxu0 0.0
  %357 = vmatpush1.msra.mxu0 0.0
  %358 = vmatprep.subr.mxu0 0.0
  %359 = vmatpush1.msra.mxu0 0.0
  %360 = vmatprep.subr.mxu0 0.0
  %361 = vmatpush1.msra.mxu0 0.0
  %362 = vmatprep.subr.mxu0 0.0
  %363 = vmatpush1.msra.mxu0 0.0
  %364 = vmatprep.subr.mxu0 0.0
  %365 = vmatpush1.msra.mxu0 0.0
  %366 = vmatprep.subr.mxu0 0.0
  %367 = vmatpush1.msra.mxu0 0.0
  %368 = vmatprep.subr.mxu0 0.0
  %369 = vmatpush1.msra.mxu0 0.0
  %370 = vmatprep.subr.mxu0 0.0
  %371 = vmatpush1.msra.mxu0 0.0
  %372 = vmatprep.subr.mxu0 0.0
  %373 = vmatpush1.msra.mxu0 0.0
  %374 = vmatprep.subr.mxu0 0.0
  %375 = vmatpush1.msra.mxu0 0.0
  %376 = vmatprep.subr.mxu0 0.0
  %377 = vmatpush1.msra.mxu0 0.0
  %378 = vmatprep.subr.mxu0 0.0
  %379 = vmatpush1.msra.mxu0 0.0
  %380 = vmatprep.subr.mxu0 0.0
  %381 = vmatpush1.msra.mxu0 0.0
  %382 = vmatprep.subr.mxu0 0.0
  %383 = vmatpush1.msra.mxu0 0.0
  %384 = vmatprep.subr.mxu0 0.0
  %385 = vmatpush1.msra.mxu0 0.0
  %386 = vmatprep.subr.mxu0 0.0
  %387 = vmatpush1.msra.mxu0 0.0
  %388 = vmatprep.subr.mxu0 0.0
  %389 = vmatpush1.msra.mxu0 0.0
  %390 = vmatprep.subr.mxu0 0.0
  %391 = vmatpush1.msra.mxu0 0.0
  %392 = vmatprep.subr.mxu0 0.0
  %393 = vmatpush1.msra.mxu0 0.0
  %394 = vmatprep.subr.mxu0 0.0
  %395 = vmatpush1.msra.mxu0 0.0
  %396 = vmatprep.subr.mxu0 0.0
  %397 = vmatpush1.msra.mxu0 0.0
  %398 = vmatprep.subr.mxu0 0.0
  %399 = vmatpush1.msra.mxu0 0.0
  %400 = vmatprep.subr.mxu0 0.0
  %401 = vmatpush1.msra.mxu0 0.0
  %402 = vmatprep.mubr.f32.mxu0 0.0
  %403 = vmatmul.mubr.f32.gmra.mrb[0].mxu0 %v333
  %v404 = vpop.f32.mrb[0].mxu0
  %v405 = vadd.f32 %v322, %v404
  %v406 = vpop.f32.mrb[0].mxu0
  %407 = vdwg.mxu0
  %v408 = vld [vmem:[%s5] sm:$0x1]
  %v409 = vld [vmem:[%s5 + $0x1] sm:$0x1]
  %v410 = vld [vmem:[%s5 + $0x2] sm:$0x1]
  %v414 = vlaneseq
  %v415 = vshrl.u32 %v414, 7
  %v416 = vsub.s32 0, %v415
  %v417 = vrot.slane %v408, %v416
  %v418 = vlaneseq
  %v419 = vshrl.u32 %v418, 7
  %v420 = vsub.s32 0, %v419
  %v421 = vrot.slane %v409, %v420
  %v422 = vlaneseq
  %v423 = vshrl.u32 %v422, 7
  %v424 = vsub.s32 0, %v423
  %v425 = vrot.slane %v410, %v424
  %v429 = vmul.f32 %v54, %v417
  %v430 = vmul.f32 %v55, %v421
  %v431 = vmul.f32 %v56, %v425
  %v432 = vsel %vm73, %v429, 0.0
  %v433 = vsel %vm73, %v430, 0.0
  %v434 = vadd.f32 %v432, %v433
  %v435 = vsel %vm73, %v431, 0.0
  %v436 = vadd.f32 %v434, %v435
  %v437 = vld [vmem:[%s6] sm:$0x1]
  %v439 = vlaneseq
  %v440 = vshrl.u32 %v439, 7
  %v441 = vsub.s32 0, %v440
  %v442 = vrot.slane %v437, %v441
  %v444 = vadd.f32 %v436, %v442
  %v446 = vrot.slane %v405, 1
  %v447 = vrot.slane %v405, 2
  %v451 = vadd.f32 %v240, %v405
  %v452 = vadd.f32 %v247, %v446
  %v453 = vadd.f32 %v254, %v447
  %v454 = vadd.f32 %v261, %v405
  %v455 = vadd.f32 %v268, %v446
  %v456 = vadd.f32 %v275, %v447
  %v457 = vadd.f32 %v286, %v444
  %v458 = vadd.f32 %v291, %v444
  %v459 = vld [vmem:[%s7] sm:$0x3f]
  %v460 = vld [vmem:[%s8] sm:$0x3f]
  %v461 = vld [vmem:[%s9] sm:$0x3f]
  %v462 = vld [vmem:[%s10] sm:$0x7]
  %v463 = vld [vmem:[%s11] sm:$0x7]
  %v464 = vld [vmem:[%s12] sm:$0x1]
  %v468 = vrot.slane %v452, 7
  %v469 = vsel %vm327, %v468, %v451
  %v470 = vrot.slane %v453, 6
  %v471 = vsel %vm329, %v470, %v469
  %v472 = vsel %vm73, %v471, 0
  %vm474 = vcmask 1045504
  %v476 = vsel %vm474, %v459, 0
  %478 = vmatprep.subr.mxu0 0.0
  %479 = vmatpush1.msra.mxu0 %v476
  %480 = vmatprep.subr.mxu0 0.0
  %481 = vmatpush1.msra.mxu0 0.0
  %482 = vmatprep.subr.mxu0 0.0
  %483 = vmatpush1.msra.mxu0 0.0
  %484 = vmatprep.subr.mxu0 0.0
  %485 = vmatpush1.msra.mxu0 0.0
  %486 = vmatprep.subr.mxu0 0.0
  %487 = vmatpush1.msra.mxu0 0.0
  %488 = vmatprep.subr.mxu0 0.0
  %489 = vmatpush1.msra.mxu0 0.0
  %490 = vmatprep.subr.mxu0 0.0
  %491 = vmatpush1.msra.mxu0 0.0
  %492 = vmatprep.subr.mxu0 0.0
  %493 = vmatpush1.msra.mxu0 0.0
  %494 = vmatprep.subr.mxu0 0.0
  %495 = vmatpush1.msra.mxu0 0.0
  %496 = vmatprep.subr.mxu0 0.0
  %497 = vmatpush1.msra.mxu0 0.0
  %498 = vmatprep.subr.mxu0 0.0
  %499 = vmatpush1.msra.mxu0 0.0
  %500 = vmatprep.subr.mxu0 0.0
  %501 = vmatpush1.msra.mxu0 0.0
  %502 = vmatprep.subr.mxu0 0.0
  %503 = vmatpush1.msra.mxu0 0.0
  %504 = vmatprep.subr.mxu0 0.0
  %505 = vmatpush1.msra.mxu0 0.0
  %506 = vmatprep.subr.mxu0 0.0
  %507 = vmatpush1.msra.mxu0 0.0
  %508 = vmatprep.subr.mxu0 0.0
  %509 = vmatpush1.msra.mxu0 0.0
  %510 = vmatprep.subr.mxu0 0.0
  %511 = vmatpush1.msra.mxu0 0.0
  %512 = vmatprep.subr.mxu0 0.0
  %513 = vmatpush1.msra.mxu0 0.0
  %514 = vmatprep.subr.mxu0 0.0
  %515 = vmatpush1.msra.mxu0 0.0
  %516 = vmatprep.subr.mxu0 0.0
  %517 = vmatpush1.msra.mxu0 0.0
  %518 = vmatprep.subr.mxu0 0.0
  %519 = vmatpush1.msra.mxu0 0.0
  %520 = vmatprep.subr.mxu0 0.0
  %521 = vmatpush1.msra.mxu0 0.0
  %522 = vmatprep.subr.mxu0 0.0
  %523 = vmatpush1.msra.mxu0 0.0
  %524 = vmatprep.subr.mxu0 0.0
  %525 = vmatpush1.msra.mxu0 0.0
  %526 = vmatprep.subr.mxu0 0.0
  %527 = vmatpush1.msra.mxu0 0.0
  %528 = vmatprep.subr.mxu0 0.0
  %529 = vmatpush1.msra.mxu0 0.0
  %530 = vmatprep.subr.mxu0 0.0
  %531 = vmatpush1.msra.mxu0 0.0
  %532 = vmatprep.subr.mxu0 0.0
  %533 = vmatpush1.msra.mxu0 0.0
  %534 = vmatprep.subr.mxu0 0.0
  %535 = vmatpush1.msra.mxu0 0.0
  %536 = vmatprep.subr.mxu0 0.0
  %537 = vmatpush1.msra.mxu0 0.0
  %538 = vmatprep.subr.mxu0 0.0
  %539 = vmatpush1.msra.mxu0 0.0
  %540 = vmatprep.subr.mxu0 0.0
  %541 = vmatpush1.msra.mxu0 0.0
  %542 = vmatprep.mubr.f32.mxu0 0.0
  %543 = vmatmul.mubr.f32.gmra.mrb[0].mxu0 %v472
  %v544 = vpop.f32.mrb[0].mxu0
  %v545 = vadd.f32 0.0, %v544
  %v546 = vpop.f32.mrb[0].mxu0
  %547 = vdwg.mxu0
  %v549 = vsel %vm73, %v457, 0
  %v552 = vsel %vm474, %v460, 0
  %554 = vmatprep.subr.mxu0 0.0
  %555 = vmatpush1.msra.mxu0 %v552
  %556 = vmatprep.subr.mxu0 0.0
  %557 = vmatpush1.msra.mxu0 0.0
  %558 = vmatprep.subr.mxu0 0.0
  %559 = vmatpush1.msra.mxu0 0.0
  %560 = vmatprep.subr.mxu0 0.0
  %561 = vmatpush1.msra.mxu0 0.0
  %562 = vmatprep.subr.mxu0 0.0
  %563 = vmatpush1.msra.mxu0 0.0
  %564 = vmatprep.subr.mxu0 0.0
  %565 = vmatpush1.msra.mxu0 0.0
  %566 = vmatprep.subr.mxu0 0.0
  %567 = vmatpush1.msra.mxu0 0.0
  %568 = vmatprep.subr.mxu0 0.0
  %569 = vmatpush1.msra.mxu0 0.0
  %570 = vmatprep.subr.mxu0 0.0
  %571 = vmatpush1.msra.mxu0 0.0
  %572 = vmatprep.subr.mxu0 0.0
  %573 = vmatpush1.msra.mxu0 0.0
  %574 = vmatprep.subr.mxu0 0.0
  %575 = vmatpush1.msra.mxu0 0.0
  %576 = vmatprep.subr.mxu0 0.0
  %577 = vmatpush1.msra.mxu0 0.0
  %578 = vmatprep.subr.mxu0 0.0
  %579 = vmatpush1.msra.mxu0 0.0
  %580 = vmatprep.subr.mxu0 0.0
  %581 = vmatpush1.msra.mxu0 0.0
  %582 = vmatprep.subr.mxu0 0.0
  %583 = vmatpush1.msra.mxu0 0.0
  %584 = vmatprep.subr.mxu0 0.0
  %585 = vmatpush1.msra.mxu0 0.0
  %586 = vmatprep.subr.mxu0 0.0
  %587 = vmatpush1.msra.mxu0 0.0
  %588 = vmatprep.subr.mxu0 0.0
  %589 = vmatpush1.msra.mxu0 0.0
  %590 = vmatprep.subr.mxu0 0.0
  %591 = vmatpush1.msra.mxu0 0.0
  %592 = vmatprep.subr.mxu0 0.0
  %593 = vmatpush1.msra.mxu0 0.0
  %594 = vmatprep.subr.mxu0 0.0
  %595 = vmatpush1.msra.mxu0 0.0
  %596 = vmatprep.subr.mxu0 0.0
  %597 = vmatpush1.msra.mxu0 0.0
  %598 = vmatprep.subr.mxu0 0.0
  %599 = vmatpush1.msra.mxu0 0.0
  %600 = vmatprep.subr.mxu0 0.0
  %601 = vmatpush1.msra.mxu0 0.0
  %602 = vmatprep.subr.mxu0 0.0
  %603 = vmatpush1.msra.mxu0 0.0
  %604 = vmatprep.subr.mxu0 0.0
  %605 = vmatpush1.msra.mxu0 0.0
  %606 = vmatprep.subr.mxu0 0.0
  %607 = vmatpush1.msra.mxu0 0.0
  %608 = vmatprep.subr.mxu0 0.0
  %609 = vmatpush1.msra.mxu0 0.0
  %610 = vmatprep.subr.mxu0 0.0
  %611 = vmatpush1.msra.mxu0 0.0
  %612 = vmatprep.subr.mxu0 0.0
  %613 = vmatpush1.msra.mxu0 0.0
  %614 = vmatprep.subr.mxu0 0.0
  %615 = vmatpush1.msra.mxu0 0.0
  %616 = vmatprep.subr.mxu0 0.0
  %617 = vmatpush1.msra.mxu0 0.0
  %618 = vmatprep.mubr.f32.mxu0 0.0
  %619 = vmatmul.mubr.f32.gmra.mrb[0].mxu0 %v549
  %v620 = vpop.f32.mrb[0].mxu0
  %v621 = vadd.f32 0.0, %v620
  %v622 = vpop.f32.mrb[0].mxu0
  %623 = vdwg.mxu0
  %v625 = vsel %vm73, %v50, 0
  %v628 = vsel %vm73, %v51, 0
  %v631 = vsel %vm474, %v461, 0
  %633 = vmatprep.subr.mxu0 0.0
  %634 = vmatpush1.msra.mxu0 %v631
  %635 = vmatprep.subr.mxu0 0.0
  %636 = vmatpush1.msra.mxu0 0.0
  %637 = vmatprep.subr.mxu0 0.0
  %638 = vmatpush1.msra.mxu0 0.0
  %639 = vmatprep.subr.mxu0 0.0
  %640 = vmatpush1.msra.mxu0 0.0
  %641 = vmatprep.subr.mxu0 0.0
  %642 = vmatpush1.msra.mxu0 0.0
  %643 = vmatprep.subr.mxu0 0.0
  %644 = vmatpush1.msra.mxu0 0.0
  %645 = vmatprep.subr.mxu0 0.0
  %646 = vmatpush1.msra.mxu0 0.0
  %647 = vmatprep.subr.mxu0 0.0
  %648 = vmatpush1.msra.mxu0 0.0
  %649 = vmatprep.subr.mxu0 0.0
  %650 = vmatpush1.msra.mxu0 0.0
  %651 = vmatprep.subr.mxu0 0.0
  %652 = vmatpush1.msra.mxu0 0.0
  %653 = vmatprep.subr.mxu0 0.0
  %654 = vmatpush1.msra.mxu0 0.0
  %655 = vmatprep.subr.mxu0 0.0
  %656 = vmatpush1.msra.mxu0 0.0
  %657 = vmatprep.subr.mxu0 0.0
  %658 = vmatpush1.msra.mxu0 0.0
  %659 = vmatprep.subr.mxu0 0.0
  %660 = vmatpush1.msra.mxu0 0.0
  %661 = vmatprep.subr.mxu0 0.0
  %662 = vmatpush1.msra.mxu0 0.0
  %663 = vmatprep.subr.mxu0 0.0
  %664 = vmatpush1.msra.mxu0 0.0
  %665 = vmatprep.subr.mxu0 0.0
  %666 = vmatpush1.msra.mxu0 0.0
  %667 = vmatprep.subr.mxu0 0.0
  %668 = vmatpush1.msra.mxu0 0.0
  %669 = vmatprep.subr.mxu0 0.0
  %670 = vmatpush1.msra.mxu0 0.0
  %671 = vmatprep.subr.mxu0 0.0
  %672 = vmatpush1.msra.mxu0 0.0
  %673 = vmatprep.subr.mxu0 0.0
  %674 = vmatpush1.msra.mxu0 0.0
  %675 = vmatprep.subr.mxu0 0.0
  %676 = vmatpush1.msra.mxu0 0.0
  %677 = vmatprep.subr.mxu0 0.0
  %678 = vmatpush1.msra.mxu0 0.0
  %679 = vmatprep.subr.mxu0 0.0
  %680 = vmatpush1.msra.mxu0 0.0
  %681 = vmatprep.subr.mxu0 0.0
  %682 = vmatpush1.msra.mxu0 0.0
  %683 = vmatprep.subr.mxu0 0.0
  %684 = vmatpush1.msra.mxu0 0.0
  %685 = vmatprep.subr.mxu0 0.0
  %686 = vmatpush1.msra.mxu0 0.0
  %687 = vmatprep.subr.mxu0 0.0
  %688 = vmatpush1.msra.mxu0 0.0
  %689 = vmatprep.subr.mxu0 0.0
  %690 = vmatpush1.msra.mxu0 0.0
  %691 = vmatprep.subr.mxu0 0.0
  %692 = vmatpush1.msra.mxu0 0.0
  %693 = vmatprep.subr.mxu0 0.0
  %694 = vmatpush1.msra.mxu0 0.0
  %695 = vmatprep.subr.mxu0 0.0
  %696 = vmatpush1.msra.mxu0 0.0
  %697 = vmatprep.mubr.f32.mxu0 0.0
  %698 = vmatmul.mubr.f32.gmra.mrb[0].mxu0 %v625
  %v699 = vpop.f32.mrb[0].mxu0
  %v700 = vadd.f32 0.0, %v699
  %v701 = vpop.f32.mrb[0].mxu0
  %702 = vmatprep.mubr.f32.mxu0 0.0
  %703 = vmatmul.mubr.f32.gmra.mrb[0].mxu0 %v628
  %v704 = vpop.f32.mrb[0].mxu0
  %v705 = vadd.f32 0.0, %v704
  %v706 = vpop.f32.mrb[0].mxu0
  %707 = vdwg.mxu0
  %v709 = vsel %vm331, %v700, 0
  %v712 = vsel %vm331, %v705, 0
  %v715 = vsel %vm331, %v545, 0
  %717 = vmatprep.subr.mxu0 0.0
  %718 = vmatpush1.xpose.msra.mxu0 %v715
  %719 = vmatprep.subr.mxu0 0.0
  %720 = vmatpush1.xpose.msra.mxu0 0.0
  %721 = vmatprep.subr.mxu0 0.0
  %722 = vmatpush1.xpose.msra.mxu0 0.0
  %723 = vmatprep.subr.mxu0 0.0
  %724 = vmatpush1.xpose.msra.mxu0 0.0
  %725 = vmatprep.subr.mxu0 0.0
  %726 = vmatpush1.xpose.msra.mxu0 0.0
  %727 = vmatprep.subr.mxu0 0.0
  %728 = vmatpush1.xpose.msra.mxu0 0.0
  %729 = vmatprep.subr.mxu0 0.0
  %730 = vmatpush1.xpose.msra.mxu0 0.0
  %731 = vmatprep.subr.mxu0 0.0
  %732 = vmatpush1.xpose.msra.mxu0 0.0
  %733 = vmatprep.subr.mxu0 0.0
  %734 = vmatpush1.xpose.msra.mxu0 0.0
  %735 = vmatprep.subr.mxu0 0.0
  %736 = vmatpush1.xpose.msra.mxu0 0.0
  %737 = vmatprep.subr.mxu0 0.0
  %738 = vmatpush1.xpose.msra.mxu0 0.0
  %739 = vmatprep.subr.mxu0 0.0
  %740 = vmatpush1.xpose.msra.mxu0 0.0
  %741 = vmatprep.subr.mxu0 0.0
  %742 = vmatpush1.xpose.msra.mxu0 0.0
  %743 = vmatprep.subr.mxu0 0.0
  %744 = vmatpush1.xpose.msra.mxu0 0.0
  %745 = vmatprep.subr.mxu0 0.0
  %746 = vmatpush1.xpose.msra.mxu0 0.0
  %747 = vmatprep.subr.mxu0 0.0
  %748 = vmatpush1.xpose.msra.mxu0 0.0
  %749 = vmatprep.subr.mxu0 0.0
  %750 = vmatpush1.xpose.msra.mxu0 0.0
  %751 = vmatprep.subr.mxu0 0.0
  %752 = vmatpush1.xpose.msra.mxu0 0.0
  %753 = vmatprep.subr.mxu0 0.0
  %754 = vmatpush1.xpose.msra.mxu0 0.0
  %755 = vmatprep.subr.mxu0 0.0
  %756 = vmatpush1.xpose.msra.mxu0 0.0
  %757 = vmatprep.subr.mxu0 0.0
  %758 = vmatpush1.xpose.msra.mxu0 0.0
  %759 = vmatprep.subr.mxu0 0.0
  %760 = vmatpush1.xpose.msra.mxu0 0.0
  %761 = vmatprep.subr.mxu0 0.0
  %762 = vmatpush1.xpose.msra.mxu0 0.0
  %763 = vmatprep.subr.mxu0 0.0
  %764 = vmatpush1.xpose.msra.mxu0 0.0
  %765 = vmatprep.subr.mxu0 0.0
  %766 = vmatpush1.xpose.msra.mxu0 0.0
  %767 = vmatprep.subr.mxu0 0.0
  %768 = vmatpush1.xpose.msra.mxu0 0.0
  %769 = vmatprep.subr.mxu0 0.0
  %770 = vmatpush1.xpose.msra.mxu0 0.0
  %771 = vmatprep.subr.mxu0 0.0
  %772 = vmatpush1.xpose.msra.mxu0 0.0
  %773 = vmatprep.subr.mxu0 0.0
  %774 = vmatpush1.xpose.msra.mxu0 0.0
  %775 = vmatprep.subr.mxu0 0.0
  %776 = vmatpush1.xpose.msra.mxu0 0.0
  %777 = vmatprep.subr.mxu0 0.0
  %778 = vmatpush1.xpose.msra.mxu0 0.0
  %779 = vmatprep.subr.mxu0 0.0
  %780 = vmatpush1.xpose.msra.mxu0 0.0
  %781 = vmatprep.mubr.f32.mxu0 0.0
  %782 = vmatmul.mubr.f32.gmra.mrb[0].mxu0 %v709
  %v783 = vpop.f32.mrb[0].mxu0
  %v784 = vadd.f32 0.0, %v783
  %v785 = vpop.f32.mrb[0].mxu0
  %786 = vmatprep.mubr.f32.mxu0 0.0
  %787 = vmatmul.mubr.f32.gmra.mrb[0].mxu0 %v712
  %v788 = vpop.f32.mrb[0].mxu0
  %v789 = vadd.f32 0.0, %v788
  %v790 = vpop.f32.mrb[0].mxu0
  %791 = vdwg.mxu0
  %v792 = vmul.f32 %v784, 0.57735026
  %v793 = vmul.f32 %v789, 0.57735026
  %v794 = vsel %vm331, %v792, -inf
  %795 = vmax.xlane.f32.xlu0 %v794
  %v796 = vpop.xlane.xlu0 %795
  %v797 = vsel %vm331, %v793, -inf
  %798 = vmax.xlane.f32.xlu0 %v797
  %v799 = vpop.xlane.xlu0 %798
  %v800 = vsub.f32 %v792, %v796
  %v801 = vsub.f32 %v793, %v799
  %v802 = vmul.f32 %v800, 1.442695
  %v803 = vpow.pop %v802
  %v804 = vmul.f32 %v801, 1.442695
  %v805 = vpow.pop %v804
  %v806 = vsel %vm331, %v803, 0.0
  %807 = vadd.xlane.f32.xlu0 %v806
  %v808 = vpop.xlane.xlu0 %807
  %v809 = vsel %vm331, %v805, 0.0
  %810 = vadd.xlane.f32.xlu0 %v809
  %v811 = vpop.xlane.xlu0 %810
  %v812 = vrcp.pop %v808
  %v813 = vrcp.pop %v811
  %v814 = vmul.f32 %v803, %v812
  %v815 = vmul.f32 %v805, %v813
  %816 = vrot.lane.b32.xlu0 %v545, 125
  %v817 = vpop.permute.xlu0 %816
  %v819 = vsel %vm331, %v814, 0
  %v822 = vsel %vm331, %v815, 0
  %v824 = vsel %vm335, %v817, 0
  %826 = vmatprep.subr.mxu0 0.0
  %827 = vmatpush1.msra.mxu0 %v824
  %828 = vmatprep.subr.mxu0 0.0
  %829 = vmatpush1.msra.mxu0 0.0
  %830 = vmatprep.subr.mxu0 0.0
  %831 = vmatpush1.msra.mxu0 0.0
  %832 = vmatprep.subr.mxu0 0.0
  %833 = vmatpush1.msra.mxu0 0.0
  %834 = vmatprep.subr.mxu0 0.0
  %835 = vmatpush1.msra.mxu0 0.0
  %836 = vmatprep.subr.mxu0 0.0
  %837 = vmatpush1.msra.mxu0 0.0
  %838 = vmatprep.subr.mxu0 0.0
  %839 = vmatpush1.msra.mxu0 0.0
  %840 = vmatprep.subr.mxu0 0.0
  %841 = vmatpush1.msra.mxu0 0.0
  %842 = vmatprep.subr.mxu0 0.0
  %843 = vmatpush1.msra.mxu0 0.0
  %844 = vmatprep.subr.mxu0 0.0
  %845 = vmatpush1.msra.mxu0 0.0
  %846 = vmatprep.subr.mxu0 0.0
  %847 = vmatpush1.msra.mxu0 0.0
  %848 = vmatprep.subr.mxu0 0.0
  %849 = vmatpush1.msra.mxu0 0.0
  %850 = vmatprep.subr.mxu0 0.0
  %851 = vmatpush1.msra.mxu0 0.0
  %852 = vmatprep.subr.mxu0 0.0
  %853 = vmatpush1.msra.mxu0 0.0
  %854 = vmatprep.subr.mxu0 0.0
  %855 = vmatpush1.msra.mxu0 0.0
  %856 = vmatprep.subr.mxu0 0.0
  %857 = vmatpush1.msra.mxu0 0.0
  %858 = vmatprep.subr.mxu0 0.0
  %859 = vmatpush1.msra.mxu0 0.0
  %860 = vmatprep.subr.mxu0 0.0
  %861 = vmatpush1.msra.mxu0 0.0
  %862 = vmatprep.subr.mxu0 0.0
  %863 = vmatpush1.msra.mxu0 0.0
  %864 = vmatprep.subr.mxu0 0.0
  %865 = vmatpush1.msra.mxu0 0.0
  %866 = vmatprep.subr.mxu0 0.0
  %867 = vmatpush1.msra.mxu0 0.0
  %868 = vmatprep.subr.mxu0 0.0
  %869 = vmatpush1.msra.mxu0 0.0
  %870 = vmatprep.subr.mxu0 0.0
  %871 = vmatpush1.msra.mxu0 0.0
  %872 = vmatprep.subr.mxu0 0.0
  %873 = vmatpush1.msra.mxu0 0.0
  %874 = vmatprep.subr.mxu0 0.0
  %875 = vmatpush1.msra.mxu0 0.0
  %876 = vmatprep.subr.mxu0 0.0
  %877 = vmatpush1.msra.mxu0 0.0
  %878 = vmatprep.subr.mxu0 0.0
  %879 = vmatpush1.msra.mxu0 0.0
  %880 = vmatprep.subr.mxu0 0.0
  %881 = vmatpush1.msra.mxu0 0.0
  %882 = vmatprep.subr.mxu0 0.0
  %883 = vmatpush1.msra.mxu0 0.0
  %884 = vmatprep.subr.mxu0 0.0
  %885 = vmatpush1.msra.mxu0 0.0
  %886 = vmatprep.subr.mxu0 0.0
  %887 = vmatpush1.msra.mxu0 0.0
  %888 = vmatprep.subr.mxu0 0.0
  %889 = vmatpush1.msra.mxu0 0.0
  %890 = vmatprep.mubr.f32.mxu0 0.0
  %891 = vmatmul.mubr.f32.gmra.mrb[0].mxu0 %v819
  %v892 = vpop.f32.mrb[0].mxu0
  %v893 = vadd.f32 0.0, %v892
  %v894 = vpop.f32.mrb[0].mxu0
  %895 = vmatprep.mubr.f32.mxu0 0.0
  %896 = vmatmul.mubr.f32.gmra.mrb[0].mxu0 %v822
  %v897 = vpop.f32.mrb[0].mxu0
  %v898 = vadd.f32 0.0, %v897
  %v899 = vpop.f32.mrb[0].mxu0
  %900 = vdwg.mxu0
  %v902 = vsel %vm331, %v621, 0
  %904 = vmatprep.subr.mxu0 0.0
  %905 = vmatpush1.xpose.msra.mxu0 %v902
  %906 = vmatprep.subr.mxu0 0.0
  %907 = vmatpush1.xpose.msra.mxu0 0.0
  %908 = vmatprep.subr.mxu0 0.0
  %909 = vmatpush1.xpose.msra.mxu0 0.0
  %910 = vmatprep.subr.mxu0 0.0
  %911 = vmatpush1.xpose.msra.mxu0 0.0
  %912 = vmatprep.subr.mxu0 0.0
  %913 = vmatpush1.xpose.msra.mxu0 0.0
  %914 = vmatprep.subr.mxu0 0.0
  %915 = vmatpush1.xpose.msra.mxu0 0.0
  %916 = vmatprep.subr.mxu0 0.0
  %917 = vmatpush1.xpose.msra.mxu0 0.0
  %918 = vmatprep.subr.mxu0 0.0
  %919 = vmatpush1.xpose.msra.mxu0 0.0
  %920 = vmatprep.subr.mxu0 0.0
  %921 = vmatpush1.xpose.msra.mxu0 0.0
  %922 = vmatprep.subr.mxu0 0.0
  %923 = vmatpush1.xpose.msra.mxu0 0.0
  %924 = vmatprep.subr.mxu0 0.0
  %925 = vmatpush1.xpose.msra.mxu0 0.0
  %926 = vmatprep.subr.mxu0 0.0
  %927 = vmatpush1.xpose.msra.mxu0 0.0
  %928 = vmatprep.subr.mxu0 0.0
  %929 = vmatpush1.xpose.msra.mxu0 0.0
  %930 = vmatprep.subr.mxu0 0.0
  %931 = vmatpush1.xpose.msra.mxu0 0.0
  %932 = vmatprep.subr.mxu0 0.0
  %933 = vmatpush1.xpose.msra.mxu0 0.0
  %934 = vmatprep.subr.mxu0 0.0
  %935 = vmatpush1.xpose.msra.mxu0 0.0
  %936 = vmatprep.subr.mxu0 0.0
  %937 = vmatpush1.xpose.msra.mxu0 0.0
  %938 = vmatprep.subr.mxu0 0.0
  %939 = vmatpush1.xpose.msra.mxu0 0.0
  %940 = vmatprep.subr.mxu0 0.0
  %941 = vmatpush1.xpose.msra.mxu0 0.0
  %942 = vmatprep.subr.mxu0 0.0
  %943 = vmatpush1.xpose.msra.mxu0 0.0
  %944 = vmatprep.subr.mxu0 0.0
  %945 = vmatpush1.xpose.msra.mxu0 0.0
  %946 = vmatprep.subr.mxu0 0.0
  %947 = vmatpush1.xpose.msra.mxu0 0.0
  %948 = vmatprep.subr.mxu0 0.0
  %949 = vmatpush1.xpose.msra.mxu0 0.0
  %950 = vmatprep.subr.mxu0 0.0
  %951 = vmatpush1.xpose.msra.mxu0 0.0
  %952 = vmatprep.subr.mxu0 0.0
  %953 = vmatpush1.xpose.msra.mxu0 0.0
  %954 = vmatprep.subr.mxu0 0.0
  %955 = vmatpush1.xpose.msra.mxu0 0.0
  %956 = vmatprep.subr.mxu0 0.0
  %957 = vmatpush1.xpose.msra.mxu0 0.0
  %958 = vmatprep.subr.mxu0 0.0
  %959 = vmatpush1.xpose.msra.mxu0 0.0
  %960 = vmatprep.subr.mxu0 0.0
  %961 = vmatpush1.xpose.msra.mxu0 0.0
  %962 = vmatprep.subr.mxu0 0.0
  %963 = vmatpush1.xpose.msra.mxu0 0.0
  %964 = vmatprep.subr.mxu0 0.0
  %965 = vmatpush1.xpose.msra.mxu0 0.0
  %966 = vmatprep.subr.mxu0 0.0
  %967 = vmatpush1.xpose.msra.mxu0 0.0
  %968 = vmatprep.mubr.f32.mxu0 0.0
  %969 = vmatmul.mubr.f32.gmra.mrb[0].mxu0 %v709
  %v970 = vpop.f32.mrb[0].mxu0
  %v971 = vadd.f32 0.0, %v970
  %v972 = vpop.f32.mrb[0].mxu0
  %973 = vmatprep.mubr.f32.mxu0 0.0
  %974 = vmatmul.mubr.f32.gmra.mrb[0].mxu0 %v712
  %v975 = vpop.f32.mrb[0].mxu0
  %v976 = vadd.f32 0.0, %v975
  %v977 = vpop.f32.mrb[0].mxu0
  %978 = vdwg.mxu0
  %v979 = vmul.f32 %v971, 0.57735026
  %v980 = vmul.f32 %v976, 0.57735026
  %vm981 = vcmask 64512
  %v982 = vsel %vm981, %v979, -inf
  %983 = vmax.xlane.f32.xlu0 %v982
  %v984 = vpop.xlane.xlu0 %983
  %v985 = vsel %vm981, %v980, -inf
  %986 = vmax.xlane.f32.xlu0 %v985
  %v987 = vpop.xlane.xlu0 %986
  %v988 = vsub.f32 %v979, %v984
  %v989 = vsub.f32 %v980, %v987
  %v990 = vmul.f32 %v988, 1.442695
  %v991 = vpow.pop %v990
  %v992 = vmul.f32 %v989, 1.442695
  %v993 = vpow.pop %v992
  %v994 = vsel %vm981, %v991, 0.0
  %995 = vadd.xlane.f32.xlu0 %v994
  %v996 = vpop.xlane.xlu0 %995
  %v997 = vsel %vm981, %v993, 0.0
  %998 = vadd.xlane.f32.xlu0 %v997
  %v999 = vpop.xlane.xlu0 %998
  %v1000 = vrcp.pop %v996
  %v1001 = vrcp.pop %v999
  %v1002 = vmul.f32 %v991, %v1000
  %v1003 = vmul.f32 %v993, %v1001
  %1004 = vrot.lane.b32.xlu0 %v621, 125
  %v1005 = vpop.permute.xlu0 %1004
  %v1008 = vsel %vm981, %v1002, 0
  %v1011 = vsel %vm981, %v1003, 0
  %1013 = vmatprep.subr.mxu0 0.0
  %1014 = vmatpush1.msra.mxu0 %v1005
  %1015 = vmatprep.subr.mxu0 0.0
  %1016 = vmatpush1.msra.mxu0 0.0
  %1017 = vmatprep.subr.mxu0 0.0
  %1018 = vmatpush1.msra.mxu0 0.0
  %1019 = vmatprep.subr.mxu0 0.0
  %1020 = vmatpush1.msra.mxu0 0.0
  %1021 = vmatprep.subr.mxu0 0.0
  %1022 = vmatpush1.msra.mxu0 0.0
  %1023 = vmatprep.subr.mxu0 0.0
  %1024 = vmatpush1.msra.mxu0 0.0
  %1025 = vmatprep.subr.mxu0 0.0
  %1026 = vmatpush1.msra.mxu0 0.0
  %1027 = vmatprep.subr.mxu0 0.0
  %1028 = vmatpush1.msra.mxu0 0.0
  %1029 = vmatprep.subr.mxu0 0.0
  %1030 = vmatpush1.msra.mxu0 0.0
  %1031 = vmatprep.subr.mxu0 0.0
  %1032 = vmatpush1.msra.mxu0 0.0
  %1033 = vmatprep.subr.mxu0 0.0
  %1034 = vmatpush1.msra.mxu0 0.0
  %1035 = vmatprep.subr.mxu0 0.0
  %1036 = vmatpush1.msra.mxu0 0.0
  %1037 = vmatprep.subr.mxu0 0.0
  %1038 = vmatpush1.msra.mxu0 0.0
  %1039 = vmatprep.subr.mxu0 0.0
  %1040 = vmatpush1.msra.mxu0 0.0
  %1041 = vmatprep.subr.mxu0 0.0
  %1042 = vmatpush1.msra.mxu0 0.0
  %1043 = vmatprep.subr.mxu0 0.0
  %1044 = vmatpush1.msra.mxu0 0.0
  %1045 = vmatprep.subr.mxu0 0.0
  %1046 = vmatpush1.msra.mxu0 0.0
  %1047 = vmatprep.subr.mxu0 0.0
  %1048 = vmatpush1.msra.mxu0 0.0
  %1049 = vmatprep.subr.mxu0 0.0
  %1050 = vmatpush1.msra.mxu0 0.0
  %1051 = vmatprep.subr.mxu0 0.0
  %1052 = vmatpush1.msra.mxu0 0.0
  %1053 = vmatprep.subr.mxu0 0.0
  %1054 = vmatpush1.msra.mxu0 0.0
  %1055 = vmatprep.subr.mxu0 0.0
  %1056 = vmatpush1.msra.mxu0 0.0
  %1057 = vmatprep.subr.mxu0 0.0
  %1058 = vmatpush1.msra.mxu0 0.0
  %1059 = vmatprep.subr.mxu0 0.0
  %1060 = vmatpush1.msra.mxu0 0.0
  %1061 = vmatprep.subr.mxu0 0.0
  %1062 = vmatpush1.msra.mxu0 0.0
  %1063 = vmatprep.subr.mxu0 0.0
  %1064 = vmatpush1.msra.mxu0 0.0
  %1065 = vmatprep.subr.mxu0 0.0
  %1066 = vmatpush1.msra.mxu0 0.0
  %1067 = vmatprep.subr.mxu0 0.0
  %1068 = vmatpush1.msra.mxu0 0.0
  %1069 = vmatprep.subr.mxu0 0.0
  %1070 = vmatpush1.msra.mxu0 0.0
  %1071 = vmatprep.subr.mxu0 0.0
  %1072 = vmatpush1.msra.mxu0 0.0
  %1073 = vmatprep.subr.mxu0 0.0
  %1074 = vmatpush1.msra.mxu0 0.0
  %1075 = vmatprep.subr.mxu0 0.0
  %1076 = vmatpush1.msra.mxu0 0.0
  %1077 = vmatprep.mubr.f32.mxu0 0.0
  %1078 = vmatmul.mubr.f32.gmra.mrb[0].mxu0 %v1008
  %v1079 = vpop.f32.mrb[0].mxu0
  %v1080 = vadd.f32 0.0, %v1079
  %v1081 = vpop.f32.mrb[0].mxu0
  %1082 = vmatprep.mubr.f32.mxu0 0.0
  %1083 = vmatmul.mubr.f32.gmra.mrb[0].mxu0 %v1011
  %v1084 = vpop.f32.mrb[0].mxu0
  %v1085 = vadd.f32 0.0, %v1084
  %v1086 = vpop.f32.mrb[0].mxu0
  %1087 = vdwg.mxu0
  %v1088 = vsel %vm331, %v893, 0.0
  %1089 = vadd.xlane.f32.xlu0 %v1088
  %v1090 = vpop.xlane.xlu0 %1089
  %v1091 = vsel %vm331, %v898, 0.0
  %1092 = vadd.xlane.f32.xlu0 %v1091
  %v1093 = vpop.xlane.xlu0 %1092
  %v1094 = vsel %vm331, %v1080, 0.0
  %1095 = vadd.xlane.f32.xlu0 %v1094
  %v1096 = vpop.xlane.xlu0 %1095
  %v1097 = vsel %vm331, %v1085, 0.0
  %1098 = vadd.xlane.f32.xlu0 %v1097
  %v1099 = vpop.xlane.xlu0 %1098
  %v1100 = vadd.f32 %v1090, %v1096
  %v1101 = vadd.f32 %v1093, %v1099
  %v1102 = vmul.f32 %v1100, 0.16666667
  %v1103 = vmul.f32 %v1101, 0.16666667
  %v1104 = vsub.f32 %v893, %v1102
  %v1105 = vsub.f32 %v898, %v1103
  %v1106 = vsub.f32 %v1080, %v1102
  %v1107 = vsub.f32 %v1085, %v1103
  %v1108 = vmul.f32 %v1104, %v1104
  %v1109 = vmul.f32 %v1105, %v1105
  %v1110 = vsel %vm331, %v1108, 0.0
  %1111 = vadd.xlane.f32.xlu0 %v1110
  %v1112 = vpop.xlane.xlu0 %1111
  %v1113 = vsel %vm331, %v1109, 0.0
  %1114 = vadd.xlane.f32.xlu0 %v1113
  %v1115 = vpop.xlane.xlu0 %1114
  %v1116 = vmul.f32 %v1106, %v1106
  %v1117 = vmul.f32 %v1107, %v1107
  %v1118 = vsel %vm331, %v1116, 0.0
  %1119 = vadd.xlane.f32.xlu0 %v1118
  %v1120 = vpop.xlane.xlu0 %1119
  %v1121 = vsel %vm331, %v1117, 0.0
  %1122 = vadd.xlane.f32.xlu0 %v1121
  %v1123 = vpop.xlane.xlu0 %1122
  %v1124 = vadd.f32 %v1112, %v1120
  %v1125 = vadd.f32 %v1115, %v1123
  %v1126 = vmul.f32 %v1124, 0.16666667
  %v1127 = vmul.f32 %v1125, 0.16666667
  %v1128 = vadd.f32 %v1126, 1e-05
  %v1129 = vadd.f32 %v1127, 1e-05
  %v1130 = vrsqrt.pop %v1128
  %v1131 = vrsqrt.pop %v1129
  %v1132 = vmul.f32 %v1104, %v1130
  %v1133 = vmul.f32 %v1105, %v1131
  %v1134 = vmul.f32 %v1106, %v1130
  %v1135 = vmul.f32 %v1107, %v1131
  %v1137 = vsel %vm331, %v1134, 0
  %v1140 = vsel %vm331, %v1135, 0
  %v1143 = vsel %vm335, %v463, 0
  %1145 = vmatprep.subr.mxu0 0.0
  %1146 = vmatpush1.msra.mxu0 %v1143
  %1147 = vmatprep.subr.mxu0 0.0
  %1148 = vmatpush1.msra.mxu0 0.0
  %1149 = vmatprep.subr.mxu0 0.0
  %1150 = vmatpush1.msra.mxu0 0.0
  %1151 = vmatprep.subr.mxu0 0.0
  %1152 = vmatpush1.msra.mxu0 0.0
  %1153 = vmatprep.subr.mxu0 0.0
  %1154 = vmatpush1.msra.mxu0 0.0
  %1155 = vmatprep.subr.mxu0 0.0
  %1156 = vmatpush1.msra.mxu0 0.0
  %1157 = vmatprep.subr.mxu0 0.0
  %1158 = vmatpush1.msra.mxu0 0.0
  %1159 = vmatprep.subr.mxu0 0.0
  %1160 = vmatpush1.msra.mxu0 0.0
  %1161 = vmatprep.subr.mxu0 0.0
  %1162 = vmatpush1.msra.mxu0 0.0
  %1163 = vmatprep.subr.mxu0 0.0
  %1164 = vmatpush1.msra.mxu0 0.0
  %1165 = vmatprep.subr.mxu0 0.0
  %1166 = vmatpush1.msra.mxu0 0.0
  %1167 = vmatprep.subr.mxu0 0.0
  %1168 = vmatpush1.msra.mxu0 0.0
  %1169 = vmatprep.subr.mxu0 0.0
  %1170 = vmatpush1.msra.mxu0 0.0
  %1171 = vmatprep.subr.mxu0 0.0
  %1172 = vmatpush1.msra.mxu0 0.0
  %1173 = vmatprep.subr.mxu0 0.0
  %1174 = vmatpush1.msra.mxu0 0.0
  %1175 = vmatprep.subr.mxu0 0.0
  %1176 = vmatpush1.msra.mxu0 0.0
  %1177 = vmatprep.subr.mxu0 0.0
  %1178 = vmatpush1.msra.mxu0 0.0
  %1179 = vmatprep.subr.mxu0 0.0
  %1180 = vmatpush1.msra.mxu0 0.0
  %1181 = vmatprep.subr.mxu0 0.0
  %1182 = vmatpush1.msra.mxu0 0.0
  %1183 = vmatprep.subr.mxu0 0.0
  %1184 = vmatpush1.msra.mxu0 0.0
  %1185 = vmatprep.subr.mxu0 0.0
  %1186 = vmatpush1.msra.mxu0 0.0
  %1187 = vmatprep.subr.mxu0 0.0
  %1188 = vmatpush1.msra.mxu0 0.0
  %1189 = vmatprep.subr.mxu0 0.0
  %1190 = vmatpush1.msra.mxu0 0.0
  %1191 = vmatprep.subr.mxu0 0.0
  %1192 = vmatpush1.msra.mxu0 0.0
  %1193 = vmatprep.subr.mxu0 0.0
  %1194 = vmatpush1.msra.mxu0 0.0
  %1195 = vmatprep.subr.mxu0 0.0
  %1196 = vmatpush1.msra.mxu0 0.0
  %1197 = vmatprep.subr.mxu0 0.0
  %1198 = vmatpush1.msra.mxu0 0.0
  %1199 = vmatprep.subr.mxu0 0.0
  %1200 = vmatpush1.msra.mxu0 0.0
  %1201 = vmatprep.subr.mxu0 0.0
  %1202 = vmatpush1.msra.mxu0 0.0
  %1203 = vmatprep.subr.mxu0 0.0
  %1204 = vmatpush1.msra.mxu0 0.0
  %1205 = vmatprep.subr.mxu0 0.0
  %1206 = vmatpush1.msra.mxu0 0.0
  %1207 = vmatprep.subr.mxu0 0.0
  %1208 = vmatpush1.msra.mxu0 0.0
  %1209 = vmatprep.mubr.f32.mxu0 0.0
  %1210 = vmatmul.mubr.f32.gmra.mrb[0].mxu0 %v1137
  %v1211 = vpop.f32.mrb[0].mxu0
  %v1212 = vadd.f32 0.0, %v1211
  %v1213 = vpop.f32.mrb[0].mxu0
  %1214 = vmatprep.mubr.f32.mxu0 0.0
  %1215 = vmatmul.mubr.f32.gmra.mrb[0].mxu0 %v1140
  %v1216 = vpop.f32.mrb[0].mxu0
  %v1217 = vadd.f32 0.0, %v1216
  %v1218 = vpop.f32.mrb[0].mxu0
  %1219 = vdwg.mxu0
  %v1221 = vsel %vm331, %v1132, 0
  %v1224 = vsel %vm331, %v1133, 0
  %v1227 = vsel %vm335, %v462, 0
  %1229 = vmatprep.subr.mxu0 0.0
  %1230 = vmatpush1.msra.mxu0 %v1227
  %1231 = vmatprep.subr.mxu0 0.0
  %1232 = vmatpush1.msra.mxu0 0.0
  %1233 = vmatprep.subr.mxu0 0.0
  %1234 = vmatpush1.msra.mxu0 0.0
  %1235 = vmatprep.subr.mxu0 0.0
  %1236 = vmatpush1.msra.mxu0 0.0
  %1237 = vmatprep.subr.mxu0 0.0
  %1238 = vmatpush1.msra.mxu0 0.0
  %1239 = vmatprep.subr.mxu0 0.0
  %1240 = vmatpush1.msra.mxu0 0.0
  %1241 = vmatprep.subr.mxu0 0.0
  %1242 = vmatpush1.msra.mxu0 0.0
  %1243 = vmatprep.subr.mxu0 0.0
  %1244 = vmatpush1.msra.mxu0 0.0
  %1245 = vmatprep.subr.mxu0 0.0
  %1246 = vmatpush1.msra.mxu0 0.0
  %1247 = vmatprep.subr.mxu0 0.0
  %1248 = vmatpush1.msra.mxu0 0.0
  %1249 = vmatprep.subr.mxu0 0.0
  %1250 = vmatpush1.msra.mxu0 0.0
  %1251 = vmatprep.subr.mxu0 0.0
  %1252 = vmatpush1.msra.mxu0 0.0
  %1253 = vmatprep.subr.mxu0 0.0
  %1254 = vmatpush1.msra.mxu0 0.0
  %1255 = vmatprep.subr.mxu0 0.0
  %1256 = vmatpush1.msra.mxu0 0.0
  %1257 = vmatprep.subr.mxu0 0.0
  %1258 = vmatpush1.msra.mxu0 0.0
  %1259 = vmatprep.subr.mxu0 0.0
  %1260 = vmatpush1.msra.mxu0 0.0
  %1261 = vmatprep.subr.mxu0 0.0
  %1262 = vmatpush1.msra.mxu0 0.0
  %1263 = vmatprep.subr.mxu0 0.0
  %1264 = vmatpush1.msra.mxu0 0.0
  %1265 = vmatprep.subr.mxu0 0.0
  %1266 = vmatpush1.msra.mxu0 0.0
  %1267 = vmatprep.subr.mxu0 0.0
  %1268 = vmatpush1.msra.mxu0 0.0
  %1269 = vmatprep.subr.mxu0 0.0
  %1270 = vmatpush1.msra.mxu0 0.0
  %1271 = vmatprep.subr.mxu0 0.0
  %1272 = vmatpush1.msra.mxu0 0.0
  %1273 = vmatprep.subr.mxu0 0.0
  %1274 = vmatpush1.msra.mxu0 0.0
  %1275 = vmatprep.subr.mxu0 0.0
  %1276 = vmatpush1.msra.mxu0 0.0
  %1277 = vmatprep.subr.mxu0 0.0
  %1278 = vmatpush1.msra.mxu0 0.0
  %1279 = vmatprep.subr.mxu0 0.0
  %1280 = vmatpush1.msra.mxu0 0.0
  %1281 = vmatprep.subr.mxu0 0.0
  %1282 = vmatpush1.msra.mxu0 0.0
  %1283 = vmatprep.subr.mxu0 0.0
  %1284 = vmatpush1.msra.mxu0 0.0
  %1285 = vmatprep.subr.mxu0 0.0
  %1286 = vmatpush1.msra.mxu0 0.0
  %1287 = vmatprep.subr.mxu0 0.0
  %1288 = vmatpush1.msra.mxu0 0.0
  %1289 = vmatprep.subr.mxu0 0.0
  %1290 = vmatpush1.msra.mxu0 0.0
  %1291 = vmatprep.subr.mxu0 0.0
  %1292 = vmatpush1.msra.mxu0 0.0
  %1293 = vmatprep.mubr.f32.mxu0 0.0
  %1294 = vmatmul.mubr.f32.gmra.mrb[0].mxu0 %v1221
  %v1295 = vpop.f32.mrb[0].mxu0
  %v1296 = vadd.f32 %v1212, %v1295
  %v1297 = vpop.f32.mrb[0].mxu0
  %1298 = vmatprep.mubr.f32.mxu0 0.0
  %1299 = vmatmul.mubr.f32.gmra.mrb[0].mxu0 %v1224
  %v1300 = vpop.f32.mrb[0].mxu0
  %v1301 = vadd.f32 %v1217, %v1300
  %v1302 = vpop.f32.mrb[0].mxu0
  %1303 = vdwg.mxu0
  %v1305 = vlaneseq
  %v1306 = vshrl.u32 %v1305, 7
  %v1307 = vsub.s32 0, %v1306
  %v1308 = vrot.slane %v464, %v1307
  %v1310 = vadd.f32 %v1296, %v1308
  %v1311 = vadd.f32 %v1301, %v1308
  %v1315 = vrot.slane %v455, 7
  %v1316 = vsel %vm327, %v1315, %v454
  %v1317 = vrot.slane %v456, 6
  %v1318 = vsel %vm329, %v1317, %v1316
  %v1319 = vsel %vm73, %v1318, 0
  %1321 = vmatprep.subr.mxu0 0.0
  %1322 = vmatpush1.msra.mxu0 %v476
  %1323 = vmatprep.subr.mxu0 0.0
  %1324 = vmatpush1.msra.mxu0 0.0
  %1325 = vmatprep.subr.mxu0 0.0
  %1326 = vmatpush1.msra.mxu0 0.0
  %1327 = vmatprep.subr.mxu0 0.0
  %1328 = vmatpush1.msra.mxu0 0.0
  %1329 = vmatprep.subr.mxu0 0.0
  %1330 = vmatpush1.msra.mxu0 0.0
  %1331 = vmatprep.subr.mxu0 0.0
  %1332 = vmatpush1.msra.mxu0 0.0
  %1333 = vmatprep.subr.mxu0 0.0
  %1334 = vmatpush1.msra.mxu0 0.0
  %1335 = vmatprep.subr.mxu0 0.0
  %1336 = vmatpush1.msra.mxu0 0.0
  %1337 = vmatprep.subr.mxu0 0.0
  %1338 = vmatpush1.msra.mxu0 0.0
  %1339 = vmatprep.subr.mxu0 0.0
  %1340 = vmatpush1.msra.mxu0 0.0
  %1341 = vmatprep.subr.mxu0 0.0
  %1342 = vmatpush1.msra.mxu0 0.0
  %1343 = vmatprep.subr.mxu0 0.0
  %1344 = vmatpush1.msra.mxu0 0.0
  %1345 = vmatprep.subr.mxu0 0.0
  %1346 = vmatpush1.msra.mxu0 0.0
  %1347 = vmatprep.subr.mxu0 0.0
  %1348 = vmatpush1.msra.mxu0 0.0
  %1349 = vmatprep.subr.mxu0 0.0
  %1350 = vmatpush1.msra.mxu0 0.0
  %1351 = vmatprep.subr.mxu0 0.0
  %1352 = vmatpush1.msra.mxu0 0.0
  %1353 = vmatprep.subr.mxu0 0.0
  %1354 = vmatpush1.msra.mxu0 0.0
  %1355 = vmatprep.subr.mxu0 0.0
  %1356 = vmatpush1.msra.mxu0 0.0
  %1357 = vmatprep.subr.mxu0 0.0
  %1358 = vmatpush1.msra.mxu0 0.0
  %1359 = vmatprep.subr.mxu0 0.0
  %1360 = vmatpush1.msra.mxu0 0.0
  %1361 = vmatprep.subr.mxu0 0.0
  %1362 = vmatpush1.msra.mxu0 0.0
  %1363 = vmatprep.subr.mxu0 0.0
  %1364 = vmatpush1.msra.mxu0 0.0
  %1365 = vmatprep.subr.mxu0 0.0
  %1366 = vmatpush1.msra.mxu0 0.0
  %1367 = vmatprep.subr.mxu0 0.0
  %1368 = vmatpush1.msra.mxu0 0.0
  %1369 = vmatprep.subr.mxu0 0.0
  %1370 = vmatpush1.msra.mxu0 0.0
  %1371 = vmatprep.subr.mxu0 0.0
  %1372 = vmatpush1.msra.mxu0 0.0
  %1373 = vmatprep.subr.mxu0 0.0
  %1374 = vmatpush1.msra.mxu0 0.0
  %1375 = vmatprep.subr.mxu0 0.0
  %1376 = vmatpush1.msra.mxu0 0.0
  %1377 = vmatprep.subr.mxu0 0.0
  %1378 = vmatpush1.msra.mxu0 0.0
  %1379 = vmatprep.subr.mxu0 0.0
  %1380 = vmatpush1.msra.mxu0 0.0
  %1381 = vmatprep.subr.mxu0 0.0
  %1382 = vmatpush1.msra.mxu0 0.0
  %1383 = vmatprep.subr.mxu0 0.0
  %1384 = vmatpush1.msra.mxu0 0.0
  %1385 = vmatprep.mubr.f32.mxu0 0.0
  %1386 = vmatmul.mubr.f32.gmra.mrb[0].mxu0 %v1319
  %v1387 = vpop.f32.mrb[0].mxu0
  %v1388 = vadd.f32 0.0, %v1387
  %v1389 = vpop.f32.mrb[0].mxu0
  %1390 = vdwg.mxu0
  %v1392 = vsel %vm73, %v458, 0
  %1394 = vmatprep.subr.mxu0 0.0
  %1395 = vmatpush1.msra.mxu0 %v552
  %1396 = vmatprep.subr.mxu0 0.0
  %1397 = vmatpush1.msra.mxu0 0.0
  %1398 = vmatprep.subr.mxu0 0.0
  %1399 = vmatpush1.msra.mxu0 0.0
  %1400 = vmatprep.subr.mxu0 0.0
  %1401 = vmatpush1.msra.mxu0 0.0
  %1402 = vmatprep.subr.mxu0 0.0
  %1403 = vmatpush1.msra.mxu0 0.0
  %1404 = vmatprep.subr.mxu0 0.0
  %1405 = vmatpush1.msra.mxu0 0.0
  %1406 = vmatprep.subr.mxu0 0.0
  %1407 = vmatpush1.msra.mxu0 0.0
  %1408 = vmatprep.subr.mxu0 0.0
  %1409 = vmatpush1.msra.mxu0 0.0
  %1410 = vmatprep.subr.mxu0 0.0
  %1411 = vmatpush1.msra.mxu0 0.0
  %1412 = vmatprep.subr.mxu0 0.0
  %1413 = vmatpush1.msra.mxu0 0.0
  %1414 = vmatprep.subr.mxu0 0.0
  %1415 = vmatpush1.msra.mxu0 0.0
  %1416 = vmatprep.subr.mxu0 0.0
  %1417 = vmatpush1.msra.mxu0 0.0
  %1418 = vmatprep.subr.mxu0 0.0
  %1419 = vmatpush1.msra.mxu0 0.0
  %1420 = vmatprep.subr.mxu0 0.0
  %1421 = vmatpush1.msra.mxu0 0.0
  %1422 = vmatprep.subr.mxu0 0.0
  %1423 = vmatpush1.msra.mxu0 0.0
  %1424 = vmatprep.subr.mxu0 0.0
  %1425 = vmatpush1.msra.mxu0 0.0
  %1426 = vmatprep.subr.mxu0 0.0
  %1427 = vmatpush1.msra.mxu0 0.0
  %1428 = vmatprep.subr.mxu0 0.0
  %1429 = vmatpush1.msra.mxu0 0.0
  %1430 = vmatprep.subr.mxu0 0.0
  %1431 = vmatpush1.msra.mxu0 0.0
  %1432 = vmatprep.subr.mxu0 0.0
  %1433 = vmatpush1.msra.mxu0 0.0
  %1434 = vmatprep.subr.mxu0 0.0
  %1435 = vmatpush1.msra.mxu0 0.0
  %1436 = vmatprep.subr.mxu0 0.0
  %1437 = vmatpush1.msra.mxu0 0.0
  %1438 = vmatprep.subr.mxu0 0.0
  %1439 = vmatpush1.msra.mxu0 0.0
  %1440 = vmatprep.subr.mxu0 0.0
  %1441 = vmatpush1.msra.mxu0 0.0
  %1442 = vmatprep.subr.mxu0 0.0
  %1443 = vmatpush1.msra.mxu0 0.0
  %1444 = vmatprep.subr.mxu0 0.0
  %1445 = vmatpush1.msra.mxu0 0.0
  %1446 = vmatprep.subr.mxu0 0.0
  %1447 = vmatpush1.msra.mxu0 0.0
  %1448 = vmatprep.subr.mxu0 0.0
  %1449 = vmatpush1.msra.mxu0 0.0
  %1450 = vmatprep.subr.mxu0 0.0
  %1451 = vmatpush1.msra.mxu0 0.0
  %1452 = vmatprep.subr.mxu0 0.0
  %1453 = vmatpush1.msra.mxu0 0.0
  %1454 = vmatprep.subr.mxu0 0.0
  %1455 = vmatpush1.msra.mxu0 0.0
  %1456 = vmatprep.subr.mxu0 0.0
  %1457 = vmatpush1.msra.mxu0 0.0
  %1458 = vmatprep.mubr.f32.mxu0 0.0
  %1459 = vmatmul.mubr.f32.gmra.mrb[0].mxu0 %v1392
  %v1460 = vpop.f32.mrb[0].mxu0
  %v1461 = vadd.f32 0.0, %v1460
  %v1462 = vpop.f32.mrb[0].mxu0
  %1463 = vdwg.mxu0
  %v1465 = vsel %vm73, %v52, 0
  %v1468 = vsel %vm73, %v53, 0
  %1470 = vmatprep.subr.mxu0 0.0
  %1471 = vmatpush1.msra.mxu0 %v631
  %1472 = vmatprep.subr.mxu0 0.0
  %1473 = vmatpush1.msra.mxu0 0.0
  %1474 = vmatprep.subr.mxu0 0.0
  %1475 = vmatpush1.msra.mxu0 0.0
  %1476 = vmatprep.subr.mxu0 0.0
  %1477 = vmatpush1.msra.mxu0 0.0
  %1478 = vmatprep.subr.mxu0 0.0
  %1479 = vmatpush1.msra.mxu0 0.0
  %1480 = vmatprep.subr.mxu0 0.0
  %1481 = vmatpush1.msra.mxu0 0.0
  %1482 = vmatprep.subr.mxu0 0.0
  %1483 = vmatpush1.msra.mxu0 0.0
  %1484 = vmatprep.subr.mxu0 0.0
  %1485 = vmatpush1.msra.mxu0 0.0
  %1486 = vmatprep.subr.mxu0 0.0
  %1487 = vmatpush1.msra.mxu0 0.0
  %1488 = vmatprep.subr.mxu0 0.0
  %1489 = vmatpush1.msra.mxu0 0.0
  %1490 = vmatprep.subr.mxu0 0.0
  %1491 = vmatpush1.msra.mxu0 0.0
  %1492 = vmatprep.subr.mxu0 0.0
  %1493 = vmatpush1.msra.mxu0 0.0
  %1494 = vmatprep.subr.mxu0 0.0
  %1495 = vmatpush1.msra.mxu0 0.0
  %1496 = vmatprep.subr.mxu0 0.0
  %1497 = vmatpush1.msra.mxu0 0.0
  %1498 = vmatprep.subr.mxu0 0.0
  %1499 = vmatpush1.msra.mxu0 0.0
  %1500 = vmatprep.subr.mxu0 0.0
  %1501 = vmatpush1.msra.mxu0 0.0
  %1502 = vmatprep.subr.mxu0 0.0
  %1503 = vmatpush1.msra.mxu0 0.0
  %1504 = vmatprep.subr.mxu0 0.0
  %1505 = vmatpush1.msra.mxu0 0.0
  %1506 = vmatprep.subr.mxu0 0.0
  %1507 = vmatpush1.msra.mxu0 0.0
  %1508 = vmatprep.subr.mxu0 0.0
  %1509 = vmatpush1.msra.mxu0 0.0
  %1510 = vmatprep.subr.mxu0 0.0
  %1511 = vmatpush1.msra.mxu0 0.0
  %1512 = vmatprep.subr.mxu0 0.0
  %1513 = vmatpush1.msra.mxu0 0.0
  %1514 = vmatprep.subr.mxu0 0.0
  %1515 = vmatpush1.msra.mxu0 0.0
  %1516 = vmatprep.subr.mxu0 0.0
  %1517 = vmatpush1.msra.mxu0 0.0
  %1518 = vmatprep.subr.mxu0 0.0
  %1519 = vmatpush1.msra.mxu0 0.0
  %1520 = vmatprep.subr.mxu0 0.0
  %1521 = vmatpush1.msra.mxu0 0.0
  %1522 = vmatprep.subr.mxu0 0.0
  %1523 = vmatpush1.msra.mxu0 0.0
  %1524 = vmatprep.subr.mxu0 0.0
  %1525 = vmatpush1.msra.mxu0 0.0
  %1526 = vmatprep.subr.mxu0 0.0
  %1527 = vmatpush1.msra.mxu0 0.0
  %1528 = vmatprep.subr.mxu0 0.0
  %1529 = vmatpush1.msra.mxu0 0.0
  %1530 = vmatprep.subr.mxu0 0.0
  %1531 = vmatpush1.msra.mxu0 0.0
  %1532 = vmatprep.subr.mxu0 0.0
  %1533 = vmatpush1.msra.mxu0 0.0
  %1534 = vmatprep.mubr.f32.mxu0 0.0
  %1535 = vmatmul.mubr.f32.gmra.mrb[0].mxu0 %v1465
  %v1536 = vpop.f32.mrb[0].mxu0
  %v1537 = vadd.f32 0.0, %v1536
  %v1538 = vpop.f32.mrb[0].mxu0
  %1539 = vmatprep.mubr.f32.mxu0 0.0
  %1540 = vmatmul.mubr.f32.gmra.mrb[0].mxu0 %v1468
  %v1541 = vpop.f32.mrb[0].mxu0
  %v1542 = vadd.f32 0.0, %v1541
  %v1543 = vpop.f32.mrb[0].mxu0
  %1544 = vdwg.mxu0
  %v1546 = vsel %vm331, %v1537, 0
  %v1549 = vsel %vm331, %v1542, 0
  %v1552 = vsel %vm331, %v1388, 0
  %1554 = vmatprep.subr.mxu0 0.0
  %1555 = vmatpush1.xpose.msra.mxu0 %v1552
  %1556 = vmatprep.subr.mxu0 0.0
  %1557 = vmatpush1.xpose.msra.mxu0 0.0
  %1558 = vmatprep.subr.mxu0 0.0
  %1559 = vmatpush1.xpose.msra.mxu0 0.0
  %1560 = vmatprep.subr.mxu0 0.0
  %1561 = vmatpush1.xpose.msra.mxu0 0.0
  %1562 = vmatprep.subr.mxu0 0.0
  %1563 = vmatpush1.xpose.msra.mxu0 0.0
  %1564 = vmatprep.subr.mxu0 0.0
  %1565 = vmatpush1.xpose.msra.mxu0 0.0
  %1566 = vmatprep.subr.mxu0 0.0
  %1567 = vmatpush1.xpose.msra.mxu0 0.0
  %1568 = vmatprep.subr.mxu0 0.0
  %1569 = vmatpush1.xpose.msra.mxu0 0.0
  %1570 = vmatprep.subr.mxu0 0.0
  %1571 = vmatpush1.xpose.msra.mxu0 0.0
  %1572 = vmatprep.subr.mxu0 0.0
  %1573 = vmatpush1.xpose.msra.mxu0 0.0
  %1574 = vmatprep.subr.mxu0 0.0
  %1575 = vmatpush1.xpose.msra.mxu0 0.0
  %1576 = vmatprep.subr.mxu0 0.0
  %1577 = vmatpush1.xpose.msra.mxu0 0.0
  %1578 = vmatprep.subr.mxu0 0.0
  %1579 = vmatpush1.xpose.msra.mxu0 0.0
  %1580 = vmatprep.subr.mxu0 0.0
  %1581 = vmatpush1.xpose.msra.mxu0 0.0
  %1582 = vmatprep.subr.mxu0 0.0
  %1583 = vmatpush1.xpose.msra.mxu0 0.0
  %1584 = vmatprep.subr.mxu0 0.0
  %1585 = vmatpush1.xpose.msra.mxu0 0.0
  %1586 = vmatprep.subr.mxu0 0.0
  %1587 = vmatpush1.xpose.msra.mxu0 0.0
  %1588 = vmatprep.subr.mxu0 0.0
  %1589 = vmatpush1.xpose.msra.mxu0 0.0
  %1590 = vmatprep.subr.mxu0 0.0
  %1591 = vmatpush1.xpose.msra.mxu0 0.0
  %1592 = vmatprep.subr.mxu0 0.0
  %1593 = vmatpush1.xpose.msra.mxu0 0.0
  %1594 = vmatprep.subr.mxu0 0.0
  %1595 = vmatpush1.xpose.msra.mxu0 0.0
  %1596 = vmatprep.subr.mxu0 0.0
  %1597 = vmatpush1.xpose.msra.mxu0 0.0
  %1598 = vmatprep.subr.mxu0 0.0
  %1599 = vmatpush1.xpose.msra.mxu0 0.0
  %1600 = vmatprep.subr.mxu0 0.0
  %1601 = vmatpush1.xpose.msra.mxu0 0.0
  %1602 = vmatprep.subr.mxu0 0.0
  %1603 = vmatpush1.xpose.msra.mxu0 0.0
  %1604 = vmatprep.subr.mxu0 0.0
  %1605 = vmatpush1.xpose.msra.mxu0 0.0
  %1606 = vmatprep.subr.mxu0 0.0
  %1607 = vmatpush1.xpose.msra.mxu0 0.0
  %1608 = vmatprep.subr.mxu0 0.0
  %1609 = vmatpush1.xpose.msra.mxu0 0.0
  %1610 = vmatprep.subr.mxu0 0.0
  %1611 = vmatpush1.xpose.msra.mxu0 0.0
  %1612 = vmatprep.subr.mxu0 0.0
  %1613 = vmatpush1.xpose.msra.mxu0 0.0
  %1614 = vmatprep.subr.mxu0 0.0
  %1615 = vmatpush1.xpose.msra.mxu0 0.0
  %1616 = vmatprep.subr.mxu0 0.0
  %1617 = vmatpush1.xpose.msra.mxu0 0.0
  %1618 = vmatprep.mubr.f32.mxu0 0.0
  %1619 = vmatmul.mubr.f32.gmra.mrb[0].mxu0 %v1546
  %v1620 = vpop.f32.mrb[0].mxu0
  %v1621 = vadd.f32 0.0, %v1620
  %v1622 = vpop.f32.mrb[0].mxu0
  %1623 = vmatprep.mubr.f32.mxu0 0.0
  %1624 = vmatmul.mubr.f32.gmra.mrb[0].mxu0 %v1549
  %v1625 = vpop.f32.mrb[0].mxu0
  %v1626 = vadd.f32 0.0, %v1625
  %v1627 = vpop.f32.mrb[0].mxu0
  %1628 = vdwg.mxu0
  %v1629 = vmul.f32 %v1621, 0.57735026
  %v1630 = vmul.f32 %v1626, 0.57735026
  %v1631 = vsel %vm331, %v1629, -inf
  %1632 = vmax.xlane.f32.xlu0 %v1631
  %v1633 = vpop.xlane.xlu0 %1632
  %v1634 = vsel %vm331, %v1630, -inf
  %1635 = vmax.xlane.f32.xlu0 %v1634
  %v1636 = vpop.xlane.xlu0 %1635
  %v1637 = vsub.f32 %v1629, %v1633
  %v1638 = vsub.f32 %v1630, %v1636
  %v1639 = vmul.f32 %v1637, 1.442695
  %v1640 = vpow.pop %v1639
  %v1641 = vmul.f32 %v1638, 1.442695
  %v1642 = vpow.pop %v1641
  %v1643 = vsel %vm331, %v1640, 0.0
  %1644 = vadd.xlane.f32.xlu0 %v1643
  %v1645 = vpop.xlane.xlu0 %1644
  %v1646 = vsel %vm331, %v1642, 0.0
  %1647 = vadd.xlane.f32.xlu0 %v1646
  %v1648 = vpop.xlane.xlu0 %1647
  %v1649 = vrcp.pop %v1645
  %v1650 = vrcp.pop %v1648
  %v1651 = vmul.f32 %v1640, %v1649
  %v1652 = vmul.f32 %v1642, %v1650
  %1653 = vrot.lane.b32.xlu0 %v1388, 125
  %v1654 = vpop.permute.xlu0 %1653
  %v1656 = vsel %vm331, %v1651, 0
  %v1659 = vsel %vm331, %v1652, 0
  %v1661 = vsel %vm335, %v1654, 0
  %1663 = vmatprep.subr.mxu0 0.0
  %1664 = vmatpush1.msra.mxu0 %v1661
  %1665 = vmatprep.subr.mxu0 0.0
  %1666 = vmatpush1.msra.mxu0 0.0
  %1667 = vmatprep.subr.mxu0 0.0
  %1668 = vmatpush1.msra.mxu0 0.0
  %1669 = vmatprep.subr.mxu0 0.0
  %1670 = vmatpush1.msra.mxu0 0.0
  %1671 = vmatprep.subr.mxu0 0.0
  %1672 = vmatpush1.msra.mxu0 0.0
  %1673 = vmatprep.subr.mxu0 0.0
  %1674 = vmatpush1.msra.mxu0 0.0
  %1675 = vmatprep.subr.mxu0 0.0
  %1676 = vmatpush1.msra.mxu0 0.0
  %1677 = vmatprep.subr.mxu0 0.0
  %1678 = vmatpush1.msra.mxu0 0.0
  %1679 = vmatprep.subr.mxu0 0.0
  %1680 = vmatpush1.msra.mxu0 0.0
  %1681 = vmatprep.subr.mxu0 0.0
  %1682 = vmatpush1.msra.mxu0 0.0
  %1683 = vmatprep.subr.mxu0 0.0
  %1684 = vmatpush1.msra.mxu0 0.0
  %1685 = vmatprep.subr.mxu0 0.0
  %1686 = vmatpush1.msra.mxu0 0.0
  %1687 = vmatprep.subr.mxu0 0.0
  %1688 = vmatpush1.msra.mxu0 0.0
  %1689 = vmatprep.subr.mxu0 0.0
  %1690 = vmatpush1.msra.mxu0 0.0
  %1691 = vmatprep.subr.mxu0 0.0
  %1692 = vmatpush1.msra.mxu0 0.0
  %1693 = vmatprep.subr.mxu0 0.0
  %1694 = vmatpush1.msra.mxu0 0.0
  %1695 = vmatprep.subr.mxu0 0.0
  %1696 = vmatpush1.msra.mxu0 0.0
  %1697 = vmatprep.subr.mxu0 0.0
  %1698 = vmatpush1.msra.mxu0 0.0
  %1699 = vmatprep.subr.mxu0 0.0
  %1700 = vmatpush1.msra.mxu0 0.0
  %1701 = vmatprep.subr.mxu0 0.0
  %1702 = vmatpush1.msra.mxu0 0.0
  %1703 = vmatprep.subr.mxu0 0.0
  %1704 = vmatpush1.msra.mxu0 0.0
  %1705 = vmatprep.subr.mxu0 0.0
  %1706 = vmatpush1.msra.mxu0 0.0
  %1707 = vmatprep.subr.mxu0 0.0
  %1708 = vmatpush1.msra.mxu0 0.0
  %1709 = vmatprep.subr.mxu0 0.0
  %1710 = vmatpush1.msra.mxu0 0.0
  %1711 = vmatprep.subr.mxu0 0.0
  %1712 = vmatpush1.msra.mxu0 0.0
  %1713 = vmatprep.subr.mxu0 0.0
  %1714 = vmatpush1.msra.mxu0 0.0
  %1715 = vmatprep.subr.mxu0 0.0
  %1716 = vmatpush1.msra.mxu0 0.0
  %1717 = vmatprep.subr.mxu0 0.0
  %1718 = vmatpush1.msra.mxu0 0.0
  %1719 = vmatprep.subr.mxu0 0.0
  %1720 = vmatpush1.msra.mxu0 0.0
  %1721 = vmatprep.subr.mxu0 0.0
  %1722 = vmatpush1.msra.mxu0 0.0
  %1723 = vmatprep.subr.mxu0 0.0
  %1724 = vmatpush1.msra.mxu0 0.0
  %1725 = vmatprep.subr.mxu0 0.0
  %1726 = vmatpush1.msra.mxu0 0.0
  %1727 = vmatprep.mubr.f32.mxu0 0.0
  %1728 = vmatmul.mubr.f32.gmra.mrb[0].mxu0 %v1656
  %v1729 = vpop.f32.mrb[0].mxu0
  %v1730 = vadd.f32 0.0, %v1729
  %v1731 = vpop.f32.mrb[0].mxu0
  %1732 = vmatprep.mubr.f32.mxu0 0.0
  %1733 = vmatmul.mubr.f32.gmra.mrb[0].mxu0 %v1659
  %v1734 = vpop.f32.mrb[0].mxu0
  %v1735 = vadd.f32 0.0, %v1734
  %v1736 = vpop.f32.mrb[0].mxu0
  %1737 = vdwg.mxu0
  %v1739 = vsel %vm331, %v1461, 0
  %1741 = vmatprep.subr.mxu0 0.0
  %1742 = vmatpush1.xpose.msra.mxu0 %v1739
  %1743 = vmatprep.subr.mxu0 0.0
  %1744 = vmatpush1.xpose.msra.mxu0 0.0
  %1745 = vmatprep.subr.mxu0 0.0
  %1746 = vmatpush1.xpose.msra.mxu0 0.0
  %1747 = vmatprep.subr.mxu0 0.0
  %1748 = vmatpush1.xpose.msra.mxu0 0.0
  %1749 = vmatprep.subr.mxu0 0.0
  %1750 = vmatpush1.xpose.msra.mxu0 0.0
  %1751 = vmatprep.subr.mxu0 0.0
  %1752 = vmatpush1.xpose.msra.mxu0 0.0
  %1753 = vmatprep.subr.mxu0 0.0
  %1754 = vmatpush1.xpose.msra.mxu0 0.0
  %1755 = vmatprep.subr.mxu0 0.0
  %1756 = vmatpush1.xpose.msra.mxu0 0.0
  %1757 = vmatprep.subr.mxu0 0.0
  %1758 = vmatpush1.xpose.msra.mxu0 0.0
  %1759 = vmatprep.subr.mxu0 0.0
  %1760 = vmatpush1.xpose.msra.mxu0 0.0
  %1761 = vmatprep.subr.mxu0 0.0
  %1762 = vmatpush1.xpose.msra.mxu0 0.0
  %1763 = vmatprep.subr.mxu0 0.0
  %1764 = vmatpush1.xpose.msra.mxu0 0.0
  %1765 = vmatprep.subr.mxu0 0.0
  %1766 = vmatpush1.xpose.msra.mxu0 0.0
  %1767 = vmatprep.subr.mxu0 0.0
  %1768 = vmatpush1.xpose.msra.mxu0 0.0
  %1769 = vmatprep.subr.mxu0 0.0
  %1770 = vmatpush1.xpose.msra.mxu0 0.0
  %1771 = vmatprep.subr.mxu0 0.0
  %1772 = vmatpush1.xpose.msra.mxu0 0.0
  %1773 = vmatprep.subr.mxu0 0.0
  %1774 = vmatpush1.xpose.msra.mxu0 0.0
  %1775 = vmatprep.subr.mxu0 0.0
  %1776 = vmatpush1.xpose.msra.mxu0 0.0
  %1777 = vmatprep.subr.mxu0 0.0
  %1778 = vmatpush1.xpose.msra.mxu0 0.0
  %1779 = vmatprep.subr.mxu0 0.0
  %1780 = vmatpush1.xpose.msra.mxu0 0.0
  %1781 = vmatprep.subr.mxu0 0.0
  %1782 = vmatpush1.xpose.msra.mxu0 0.0
  %1783 = vmatprep.subr.mxu0 0.0
  %1784 = vmatpush1.xpose.msra.mxu0 0.0
  %1785 = vmatprep.subr.mxu0 0.0
  %1786 = vmatpush1.xpose.msra.mxu0 0.0
  %1787 = vmatprep.subr.mxu0 0.0
  %1788 = vmatpush1.xpose.msra.mxu0 0.0
  %1789 = vmatprep.subr.mxu0 0.0
  %1790 = vmatpush1.xpose.msra.mxu0 0.0
  %1791 = vmatprep.subr.mxu0 0.0
  %1792 = vmatpush1.xpose.msra.mxu0 0.0
  %1793 = vmatprep.subr.mxu0 0.0
  %1794 = vmatpush1.xpose.msra.mxu0 0.0
  %1795 = vmatprep.subr.mxu0 0.0
  %1796 = vmatpush1.xpose.msra.mxu0 0.0
  %1797 = vmatprep.subr.mxu0 0.0
  %1798 = vmatpush1.xpose.msra.mxu0 0.0
  %1799 = vmatprep.subr.mxu0 0.0
  %1800 = vmatpush1.xpose.msra.mxu0 0.0
  %1801 = vmatprep.subr.mxu0 0.0
  %1802 = vmatpush1.xpose.msra.mxu0 0.0
  %1803 = vmatprep.subr.mxu0 0.0
  %1804 = vmatpush1.xpose.msra.mxu0 0.0
  %1805 = vmatprep.mubr.f32.mxu0 0.0
  %1806 = vmatmul.mubr.f32.gmra.mrb[0].mxu0 %v1546
  %v1807 = vpop.f32.mrb[0].mxu0
  %v1808 = vadd.f32 0.0, %v1807
  %v1809 = vpop.f32.mrb[0].mxu0
  %1810 = vmatprep.mubr.f32.mxu0 0.0
  %1811 = vmatmul.mubr.f32.gmra.mrb[0].mxu0 %v1549
  %v1812 = vpop.f32.mrb[0].mxu0
  %v1813 = vadd.f32 0.0, %v1812
  %v1814 = vpop.f32.mrb[0].mxu0
  %1815 = vdwg.mxu0
  %v1816 = vmul.f32 %v1808, 0.57735026
  %v1817 = vmul.f32 %v1813, 0.57735026
  %v1818 = vsel %vm981, %v1816, -inf
  %1819 = vmax.xlane.f32.xlu0 %v1818
  %v1820 = vpop.xlane.xlu0 %1819
  %v1821 = vsel %vm981, %v1817, -inf
  %1822 = vmax.xlane.f32.xlu0 %v1821
  %v1823 = vpop.xlane.xlu0 %1822
  %v1824 = vsub.f32 %v1816, %v1820
  %v1825 = vsub.f32 %v1817, %v1823
  %v1826 = vmul.f32 %v1824, 1.442695
  %v1827 = vpow.pop %v1826
  %v1828 = vmul.f32 %v1825, 1.442695
  %v1829 = vpow.pop %v1828
  %v1830 = vsel %vm981, %v1827, 0.0
  %1831 = vadd.xlane.f32.xlu0 %v1830
  %v1832 = vpop.xlane.xlu0 %1831
  %v1833 = vsel %vm981, %v1829, 0.0
  %1834 = vadd.xlane.f32.xlu0 %v1833
  %v1835 = vpop.xlane.xlu0 %1834
  %v1836 = vrcp.pop %v1832
  %v1837 = vrcp.pop %v1835
  %v1838 = vmul.f32 %v1827, %v1836
  %v1839 = vmul.f32 %v1829, %v1837
  %1840 = vrot.lane.b32.xlu0 %v1461, 125
  %v1841 = vpop.permute.xlu0 %1840
  %v1844 = vsel %vm981, %v1838, 0
  %v1847 = vsel %vm981, %v1839, 0
  %1849 = vmatprep.subr.mxu0 0.0
  %1850 = vmatpush1.msra.mxu0 %v1841
  %1851 = vmatprep.subr.mxu0 0.0
  %1852 = vmatpush1.msra.mxu0 0.0
  %1853 = vmatprep.subr.mxu0 0.0
  %1854 = vmatpush1.msra.mxu0 0.0
  %1855 = vmatprep.subr.mxu0 0.0
  %1856 = vmatpush1.msra.mxu0 0.0
  %1857 = vmatprep.subr.mxu0 0.0
  %1858 = vmatpush1.msra.mxu0 0.0
  %1859 = vmatprep.subr.mxu0 0.0
  %1860 = vmatpush1.msra.mxu0 0.0
  %1861 = vmatprep.subr.mxu0 0.0
  %1862 = vmatpush1.msra.mxu0 0.0
  %1863 = vmatprep.subr.mxu0 0.0
  %1864 = vmatpush1.msra.mxu0 0.0
  %1865 = vmatprep.subr.mxu0 0.0
  %1866 = vmatpush1.msra.mxu0 0.0
  %1867 = vmatprep.subr.mxu0 0.0
  %1868 = vmatpush1.msra.mxu0 0.0
  %1869 = vmatprep.subr.mxu0 0.0
  %1870 = vmatpush1.msra.mxu0 0.0
  %1871 = vmatprep.subr.mxu0 0.0
  %1872 = vmatpush1.msra.mxu0 0.0
  %1873 = vmatprep.subr.mxu0 0.0
  %1874 = vmatpush1.msra.mxu0 0.0
  %1875 = vmatprep.subr.mxu0 0.0
  %1876 = vmatpush1.msra.mxu0 0.0
  %1877 = vmatprep.subr.mxu0 0.0
  %1878 = vmatpush1.msra.mxu0 0.0
  %1879 = vmatprep.subr.mxu0 0.0
  %1880 = vmatpush1.msra.mxu0 0.0
  %1881 = vmatprep.subr.mxu0 0.0
  %1882 = vmatpush1.msra.mxu0 0.0
  %1883 = vmatprep.subr.mxu0 0.0
  %1884 = vmatpush1.msra.mxu0 0.0
  %1885 = vmatprep.subr.mxu0 0.0
  %1886 = vmatpush1.msra.mxu0 0.0
  %1887 = vmatprep.subr.mxu0 0.0
  %1888 = vmatpush1.msra.mxu0 0.0
  %1889 = vmatprep.subr.mxu0 0.0
  %1890 = vmatpush1.msra.mxu0 0.0
  %1891 = vmatprep.subr.mxu0 0.0
  %1892 = vmatpush1.msra.mxu0 0.0
  %1893 = vmatprep.subr.mxu0 0.0
  %1894 = vmatpush1.msra.mxu0 0.0
  %1895 = vmatprep.subr.mxu0 0.0
  %1896 = vmatpush1.msra.mxu0 0.0
  %1897 = vmatprep.subr.mxu0 0.0
  %1898 = vmatpush1.msra.mxu0 0.0
  %1899 = vmatprep.subr.mxu0 0.0
  %1900 = vmatpush1.msra.mxu0 0.0
  %1901 = vmatprep.subr.mxu0 0.0
  %1902 = vmatpush1.msra.mxu0 0.0
  %1903 = vmatprep.subr.mxu0 0.0
  %1904 = vmatpush1.msra.mxu0 0.0
  %1905 = vmatprep.subr.mxu0 0.0
  %1906 = vmatpush1.msra.mxu0 0.0
  %1907 = vmatprep.subr.mxu0 0.0
  %1908 = vmatpush1.msra.mxu0 0.0
  %1909 = vmatprep.subr.mxu0 0.0
  %1910 = vmatpush1.msra.mxu0 0.0
  %1911 = vmatprep.subr.mxu0 0.0
  %1912 = vmatpush1.msra.mxu0 0.0
  %1913 = vmatprep.mubr.f32.mxu0 0.0
  %1914 = vmatmul.mubr.f32.gmra.mrb[0].mxu0 %v1844
  %v1915 = vpop.f32.mrb[0].mxu0
  %v1916 = vadd.f32 0.0, %v1915
  %v1917 = vpop.f32.mrb[0].mxu0
  %1918 = vmatprep.mubr.f32.mxu0 0.0
  %1919 = vmatmul.mubr.f32.gmra.mrb[0].mxu0 %v1847
  %v1920 = vpop.f32.mrb[0].mxu0
  %v1921 = vadd.f32 0.0, %v1920
  %v1922 = vpop.f32.mrb[0].mxu0
  %1923 = vdwg.mxu0
  %v1924 = vsel %vm331, %v1730, 0.0
  %1925 = vadd.xlane.f32.xlu0 %v1924
  %v1926 = vpop.xlane.xlu0 %1925
  %v1927 = vsel %vm331, %v1735, 0.0
  %1928 = vadd.xlane.f32.xlu0 %v1927
  %v1929 = vpop.xlane.xlu0 %1928
  %v1930 = vsel %vm331, %v1916, 0.0
  %1931 = vadd.xlane.f32.xlu0 %v1930
  %v1932 = vpop.xlane.xlu0 %1931
  %v1933 = vsel %vm331, %v1921, 0.0
  %1934 = vadd.xlane.f32.xlu0 %v1933
  %v1935 = vpop.xlane.xlu0 %1934
  %v1936 = vadd.f32 %v1926, %v1932
  %v1937 = vadd.f32 %v1929, %v1935
  %v1938 = vmul.f32 %v1936, 0.16666667
  %v1939 = vmul.f32 %v1937, 0.16666667
  %v1940 = vsub.f32 %v1730, %v1938
  %v1941 = vsub.f32 %v1735, %v1939
  %v1942 = vsub.f32 %v1916, %v1938
  %v1943 = vsub.f32 %v1921, %v1939
  %v1944 = vmul.f32 %v1940, %v1940
  %v1945 = vmul.f32 %v1941, %v1941
  %v1946 = vsel %vm331, %v1944, 0.0
  %1947 = vadd.xlane.f32.xlu0 %v1946
  %v1948 = vpop.xlane.xlu0 %1947
  %v1949 = vsel %vm331, %v1945, 0.0
  %1950 = vadd.xlane.f32.xlu0 %v1949
  %v1951 = vpop.xlane.xlu0 %1950
  %v1952 = vmul.f32 %v1942, %v1942
  %v1953 = vmul.f32 %v1943, %v1943
  %v1954 = vsel %vm331, %v1952, 0.0
  %1955 = vadd.xlane.f32.xlu0 %v1954
  %v1956 = vpop.xlane.xlu0 %1955
  %v1957 = vsel %vm331, %v1953, 0.0
  %1958 = vadd.xlane.f32.xlu0 %v1957
  %v1959 = vpop.xlane.xlu0 %1958
  %v1960 = vadd.f32 %v1948, %v1956
  %v1961 = vadd.f32 %v1951, %v1959
  %v1962 = vmul.f32 %v1960, 0.16666667
  %v1963 = vmul.f32 %v1961, 0.16666667
  %v1964 = vadd.f32 %v1962, 1e-05
  %v1965 = vadd.f32 %v1963, 1e-05
  %v1966 = vrsqrt.pop %v1964
  %v1967 = vrsqrt.pop %v1965
  %v1968 = vmul.f32 %v1940, %v1966
  %v1969 = vmul.f32 %v1941, %v1967
  %v1970 = vmul.f32 %v1942, %v1966
  %v1971 = vmul.f32 %v1943, %v1967
  %v1973 = vsel %vm331, %v1970, 0
  %v1976 = vsel %vm331, %v1971, 0
  %1978 = vmatprep.subr.mxu0 0.0
  %1979 = vmatpush1.msra.mxu0 %v1143
  %1980 = vmatprep.subr.mxu0 0.0
  %1981 = vmatpush1.msra.mxu0 0.0
  %1982 = vmatprep.subr.mxu0 0.0
  %1983 = vmatpush1.msra.mxu0 0.0
  %1984 = vmatprep.subr.mxu0 0.0
  %1985 = vmatpush1.msra.mxu0 0.0
  %1986 = vmatprep.subr.mxu0 0.0
  %1987 = vmatpush1.msra.mxu0 0.0
  %1988 = vmatprep.subr.mxu0 0.0
  %1989 = vmatpush1.msra.mxu0 0.0
  %1990 = vmatprep.subr.mxu0 0.0
  %1991 = vmatpush1.msra.mxu0 0.0
  %1992 = vmatprep.subr.mxu0 0.0
  %1993 = vmatpush1.msra.mxu0 0.0
  %1994 = vmatprep.subr.mxu0 0.0
  %1995 = vmatpush1.msra.mxu0 0.0
  %1996 = vmatprep.subr.mxu0 0.0
  %1997 = vmatpush1.msra.mxu0 0.0
  %1998 = vmatprep.subr.mxu0 0.0
  %1999 = vmatpush1.msra.mxu0 0.0
  %2000 = vmatprep.subr.mxu0 0.0
  %2001 = vmatpush1.msra.mxu0 0.0
  %2002 = vmatprep.subr.mxu0 0.0
  %2003 = vmatpush1.msra.mxu0 0.0
  %2004 = vmatprep.subr.mxu0 0.0
  %2005 = vmatpush1.msra.mxu0 0.0
  %2006 = vmatprep.subr.mxu0 0.0
  %2007 = vmatpush1.msra.mxu0 0.0
  %2008 = vmatprep.subr.mxu0 0.0
  %2009 = vmatpush1.msra.mxu0 0.0
  %2010 = vmatprep.subr.mxu0 0.0
  %2011 = vmatpush1.msra.mxu0 0.0
  %2012 = vmatprep.subr.mxu0 0.0
  %2013 = vmatpush1.msra.mxu0 0.0
  %2014 = vmatprep.subr.mxu0 0.0
  %2015 = vmatpush1.msra.mxu0 0.0
  %2016 = vmatprep.subr.mxu0 0.0
  %2017 = vmatpush1.msra.mxu0 0.0
  %2018 = vmatprep.subr.mxu0 0.0
  %2019 = vmatpush1.msra.mxu0 0.0
  %2020 = vmatprep.subr.mxu0 0.0
  %2021 = vmatpush1.msra.mxu0 0.0
  %2022 = vmatprep.subr.mxu0 0.0
  %2023 = vmatpush1.msra.mxu0 0.0
  %2024 = vmatprep.subr.mxu0 0.0
  %2025 = vmatpush1.msra.mxu0 0.0
  %2026 = vmatprep.subr.mxu0 0.0
  %2027 = vmatpush1.msra.mxu0 0.0
  %2028 = vmatprep.subr.mxu0 0.0
  %2029 = vmatpush1.msra.mxu0 0.0
  %2030 = vmatprep.subr.mxu0 0.0
  %2031 = vmatpush1.msra.mxu0 0.0
  %2032 = vmatprep.subr.mxu0 0.0
  %2033 = vmatpush1.msra.mxu0 0.0
  %2034 = vmatprep.subr.mxu0 0.0
  %2035 = vmatpush1.msra.mxu0 0.0
  %2036 = vmatprep.subr.mxu0 0.0
  %2037 = vmatpush1.msra.mxu0 0.0
  %2038 = vmatprep.subr.mxu0 0.0
  %2039 = vmatpush1.msra.mxu0 0.0
  %2040 = vmatprep.subr.mxu0 0.0
  %2041 = vmatpush1.msra.mxu0 0.0
  %2042 = vmatprep.mubr.f32.mxu0 0.0
  %2043 = vmatmul.mubr.f32.gmra.mrb[0].mxu0 %v1973
  %v2044 = vpop.f32.mrb[0].mxu0
  %v2045 = vadd.f32 0.0, %v2044
  %v2046 = vpop.f32.mrb[0].mxu0
  %2047 = vmatprep.mubr.f32.mxu0 0.0
  %2048 = vmatmul.mubr.f32.gmra.mrb[0].mxu0 %v1976
  %v2049 = vpop.f32.mrb[0].mxu0
  %v2050 = vadd.f32 0.0, %v2049
  %v2051 = vpop.f32.mrb[0].mxu0
  %2052 = vdwg.mxu0
  %v2054 = vsel %vm331, %v1968, 0
  %v2057 = vsel %vm331, %v1969, 0
  %2059 = vmatprep.subr.mxu0 0.0
  %2060 = vmatpush1.msra.mxu0 %v1227
  %2061 = vmatprep.subr.mxu0 0.0
  %2062 = vmatpush1.msra.mxu0 0.0
  %2063 = vmatprep.subr.mxu0 0.0
  %2064 = vmatpush1.msra.mxu0 0.0
  %2065 = vmatprep.subr.mxu0 0.0
  %2066 = vmatpush1.msra.mxu0 0.0
  %2067 = vmatprep.subr.mxu0 0.0
  %2068 = vmatpush1.msra.mxu0 0.0
  %2069 = vmatprep.subr.mxu0 0.0
  %2070 = vmatpush1.msra.mxu0 0.0
  %2071 = vmatprep.subr.mxu0 0.0
  %2072 = vmatpush1.msra.mxu0 0.0
  %2073 = vmatprep.subr.mxu0 0.0
  %2074 = vmatpush1.msra.mxu0 0.0
  %2075 = vmatprep.subr.mxu0 0.0
  %2076 = vmatpush1.msra.mxu0 0.0
  %2077 = vmatprep.subr.mxu0 0.0
  %2078 = vmatpush1.msra.mxu0 0.0
  %2079 = vmatprep.subr.mxu0 0.0
  %2080 = vmatpush1.msra.mxu0 0.0
  %2081 = vmatprep.subr.mxu0 0.0
  %2082 = vmatpush1.msra.mxu0 0.0
  %2083 = vmatprep.subr.mxu0 0.0
  %2084 = vmatpush1.msra.mxu0 0.0
  %2085 = vmatprep.subr.mxu0 0.0
  %2086 = vmatpush1.msra.mxu0 0.0
  %2087 = vmatprep.subr.mxu0 0.0
  %2088 = vmatpush1.msra.mxu0 0.0
  %2089 = vmatprep.subr.mxu0 0.0
  %2090 = vmatpush1.msra.mxu0 0.0
  %2091 = vmatprep.subr.mxu0 0.0
  %2092 = vmatpush1.msra.mxu0 0.0
  %2093 = vmatprep.subr.mxu0 0.0
  %2094 = vmatpush1.msra.mxu0 0.0
  %2095 = vmatprep.subr.mxu0 0.0
  %2096 = vmatpush1.msra.mxu0 0.0
  %2097 = vmatprep.subr.mxu0 0.0
  %2098 = vmatpush1.msra.mxu0 0.0
  %2099 = vmatprep.subr.mxu0 0.0
  %2100 = vmatpush1.msra.mxu0 0.0
  %2101 = vmatprep.subr.mxu0 0.0
  %2102 = vmatpush1.msra.mxu0 0.0
  %2103 = vmatprep.subr.mxu0 0.0
  %2104 = vmatpush1.msra.mxu0 0.0
  %2105 = vmatprep.subr.mxu0 0.0
  %2106 = vmatpush1.msra.mxu0 0.0
  %2107 = vmatprep.subr.mxu0 0.0
  %2108 = vmatpush1.msra.mxu0 0.0
  %2109 = vmatprep.subr.mxu0 0.0
  %2110 = vmatpush1.msra.mxu0 0.0
  %2111 = vmatprep.subr.mxu0 0.0
  %2112 = vmatpush1.msra.mxu0 0.0
  %2113 = vmatprep.subr.mxu0 0.0
  %2114 = vmatpush1.msra.mxu0 0.0
  %2115 = vmatprep.subr.mxu0 0.0
  %2116 = vmatpush1.msra.mxu0 0.0
  %2117 = vmatprep.subr.mxu0 0.0
  %2118 = vmatpush1.msra.mxu0 0.0
  %2119 = vmatprep.subr.mxu0 0.0
  %2120 = vmatpush1.msra.mxu0 0.0
  %2121 = vmatprep.subr.mxu0 0.0
  %2122 = vmatpush1.msra.mxu0 0.0
  %2123 = vmatprep.mubr.f32.mxu0 0.0
  %2124 = vmatmul.mubr.f32.gmra.mrb[0].mxu0 %v2054
  %v2125 = vpop.f32.mrb[0].mxu0
  %v2126 = vadd.f32 %v2045, %v2125
  %v2127 = vpop.f32.mrb[0].mxu0
  %2128 = vmatprep.mubr.f32.mxu0 0.0
  %2129 = vmatmul.mubr.f32.gmra.mrb[0].mxu0 %v2057
  %v2130 = vpop.f32.mrb[0].mxu0
  %v2131 = vadd.f32 %v2050, %v2130
  %v2132 = vpop.f32.mrb[0].mxu0
  %2133 = vdwg.mxu0
  %v2134 = vadd.f32 %v2126, %v1308
  %v2135 = vadd.f32 %v2131, %v1308
  %v2136 = vsel %vm73, %v1310, 0.0
  %v2137 = vsel %vm73, %v1311, 0.0
  %v2138 = vadd.f32 %v2136, %v2137
  %v2139 = vrot.slane %v2138, 4
  %v2140 = vadd.f32 %v2138, %v2139
  %v2141 = vrot.slane %v2140, 2
  %v2142 = vadd.f32 %v2140, %v2141
  %v2143 = vrot.slane %v2142, 1
  %v2144 = vadd.f32 %v2142, %v2143
  %v2145 = vadd.f32 %v2144, 0.0
  %v2146 = vsel %vm73, %v2134, 0.0
  %v2147 = vsel %vm73, %v2135, 0.0
  %v2148 = vadd.f32 %v2146, %v2147
  %v2149 = vrot.slane %v2148, 4
  %v2150 = vadd.f32 %v2148, %v2149
  %v2151 = vrot.slane %v2150, 2
  %v2152 = vadd.f32 %v2150, %v2151
  %v2153 = vrot.slane %v2152, 1
  %v2154 = vadd.f32 %v2152, %v2153
  %v2155 = vadd.f32 %v2145, %v2154
  %v2156 = vmul.f32 %v2155, 0.03125
  %v2157 = vsub.f32 %v1310, %v2156
  %v2158 = vsub.f32 %v1311, %v2156
  %v2159 = vmul.f32 %v2157, %v2157
  %v2160 = vmul.f32 %v2158, %v2158
  %v2161 = vsel %vm73, %v2159, 0.0
  %v2162 = vsel %vm73, %v2160, 0.0
  %v2163 = vadd.f32 %v2161, %v2162
  %v2164 = vrot.slane %v2163, 4
  %v2165 = vadd.f32 %v2163, %v2164
  %v2166 = vrot.slane %v2165, 2
  %v2167 = vadd.f32 %v2165, %v2166
  %v2168 = vrot.slane %v2167, 1
  %v2169 = vadd.f32 %v2167, %v2168
  %v2170 = vadd.f32 %v2169, 0.0
  %v2171 = vsub.f32 %v2134, %v2156
  %v2172 = vsub.f32 %v2135, %v2156
  %v2173 = vmul.f32 %v2171, %v2171
  %v2174 = vmul.f32 %v2172, %v2172
  %v2175 = vsel %vm73, %v2173, 0.0
  %v2176 = vsel %vm73, %v2174, 0.0
  %v2177 = vadd.f32 %v2175, %v2176
  %v2178 = vrot.slane %v2177, 4
  %v2179 = vadd.f32 %v2177, %v2178
  %v2180 = vrot.slane %v2179, 2
  %v2181 = vadd.f32 %v2179, %v2180
  %v2182 = vrot.slane %v2181, 1
  %v2183 = vadd.f32 %v2181, %v2182
  %v2184 = vadd.f32 %v2170, %v2183
  %v2185 = vmul.f32 %v2184, 0.03125
  %v2186 = vadd.f32 %v2185, 1e-05
  %v2187 = vrsqrt.pop %v2186
  %v2188 = vld [vmem:[%s13] sm:$0x1]
  %v2189 = vmul.f32 %v2187, %v2188
  %v2190 = vld [vmem:[%s14] sm:$0x1]
  %v2191 = vlaneseq
  %v2192 = vshrl.u32 %v2191, 7
  %v2193 = vsub.s32 0, %v2192
  %v2194 = vrot.slane %v2189, %v2193
  %v2195 = vmul.f32 %v2157, %v2194
  %v2196 = vmul.f32 %v2158, %v2194
  %v2197 = vadd.f32 %v50, %v2195
  %v2198 = vadd.f32 %v51, %v2196
  %v2200 = vlaneseq
  %v2201 = vshrl.u32 %v2200, 7
  %v2202 = vsub.s32 0, %v2201
  %v2203 = vrot.slane %v2190, %v2202
  %v2205 = vadd.f32 %v2197, %v2203
  %v2206 = vadd.f32 %v2198, %v2203
  %vm2207 = vcmp.ge.f32.partialorder %v2205, 0.0
  %vm2208 = vcmp.ge.f32.partialorder %v2206, 0.0
  %v2209 = vmul.f32 %v2205, 0.2
  %v2210 = vmul.f32 %v2206, 0.2
  %v2211 = vsel %vm2207, %v2205, %v2209
  %v2212 = vsel %vm2208, %v2206, %v2210
  %2213 = vst.msk [vmem:[%s15] sm:$0xff] %vm73, %v2211
  %2214 = vst.msk [vmem:[%s15 + $0x8] sm:$0xff] %vm73, %v2212
  %v2215 = vmul.f32 %v2171, %v2194
  %v2216 = vmul.f32 %v2172, %v2194
  %v2217 = vadd.f32 %v52, %v2215
  %v2218 = vadd.f32 %v53, %v2216
  %v2219 = vadd.f32 %v2217, %v2203
  %v2220 = vadd.f32 %v2218, %v2203
  %vm2221 = vcmp.ge.f32.partialorder %v2219, 0.0
  %vm2222 = vcmp.ge.f32.partialorder %v2220, 0.0
  %v2223 = vmul.f32 %v2219, 0.2
  %v2224 = vmul.f32 %v2220, 0.2
  %v2225 = vsel %vm2221, %v2219, %v2223
  %v2226 = vsel %vm2222, %v2220, %v2224
  %s2227 = scalar_lea.vmem %s15, 16
  %2228 = vst.msk [vmem:[%s2227] sm:$0xff] %vm73, %v2225
  %2229 = vst.msk [vmem:[%s2227 + $0x8] sm:$0xff] %vm73, %v2226
  // Predicated region
  $region62: #{kpc_fu_forward.1} parent=0 // pred_check
    _
  $region63: #{kpc_fu_forward.1} parent=0 // pred_check_branch
    %2231 = sbr.rel (0) target = $region65
  $region64: #{kpc_fu_forward.1} parent=0 // pred_region
    _
  $region65: #{kpc_fu_forward.1} parent=0 // pred_fallthru
    _
  // Predicated region
  $region66: #{kpc_fu_forward.1} parent=0 // pred_check
    _
  $region67: #{kpc_fu_forward.1} parent=0 // pred_check_branch
    %2233 = sbr.rel (0) target = $region69
  $region68: #{kpc_fu_forward.1} parent=0 // pred_region
    _
  $region69: #{kpc_fu_forward.1} parent=0 // pred_fallthru
    _

</llo_original>
